<compile_context>
chip_gen: v7x
topology: tpu7x:2x2x1
jax: 0.10.0
libtpu: 0.0.40
codegen_flags: <defaults>
</compile_context>

<pallas_src>
import functools

import jax
import jax.numpy as jnp
from jax.experimental import pallas as pl
from jax.experimental.pallas import tpu as pltpu

LN_EPS = 1e-5


def _encoder_layer_kernel(x_ref,
                          wqkv_ref, bqkv_ref, wo_ref, bo_ref,
                          g1_ref, be1_ref,
                          wff1_ref, bff1_ref, wff2_ref, bff2_ref,
                          g2_ref, be2_ref,
                          o_ref,
                          qkv_ref,
                          *, num_heads, batch_tile, seq):
    """One grid step == one TransformerEncoderLayer applied to one row tile."""
    layer = pl.program_id(1)
    rows, d_model = x_ref.shape
    dh = d_model // num_heads
    scale = 1.0 / (dh ** 0.5)

    # Layer 0 seeds the resident activation.  o_ref's block index is constant
    # across the layer axis, so it stays in VMEM for the whole stack of this
    # tile and is written back to HBM only when the tile index changes.
    @pl.when(layer == 0)
    def _():
        o_ref[...] = x_ref[...]

    x = o_ref[...]                              # [rows, D] f32, carried across layers
    xb = x.astype(jnp.bfloat16)

    # Fused Q|K|V projection, materialized once as bf16 in VMEM scratch.
    qkv_ref[...] = (jnp.dot(xb, wqkv_ref[0], preferred_element_type=jnp.float32)
                    + bqkv_ref[0]).astype(jnp.bfloat16)

    # --- multi-head scaled dot-product self-attention ------------------------
    # Batched over the tile's batch dim; Wo folded into the head loop so all
    # partial results are lane-dense [rows, D] f32 accumulations.
    att_acc = None
    for h in range(num_heads):
        c = h * dh
        qh = qkv_ref[:, c:c + dh].reshape(batch_tile, seq, dh)
        kh = qkv_ref[:, d_model + c:d_model + c + dh].reshape(batch_tile, seq, dh)
        vh = qkv_ref[:, 2 * d_model + c:2 * d_model + c + dh].reshape(batch_tile, seq, dh)
        s = jnp.einsum('bqd,bkd->bqk', qh, kh,
                       preferred_element_type=jnp.float32) * scale     # no explicit K^T
        s = s - jnp.max(s, axis=-1, keepdims=True)
        p = jnp.exp(s)
        p = p * pl.reciprocal(jnp.sum(p, axis=-1, keepdims=True), approx=True)
        ah = jnp.einsum('bqk,bkd->bqd', p.astype(jnp.bfloat16), vh,
                        preferred_element_type=jnp.float32)            # [TB, S, dh]
        part = jnp.dot(ah.reshape(rows, dh).astype(jnp.bfloat16),
                       wo_ref[0, c:c + dh, :],
                       preferred_element_type=jnp.float32)             # [rows, D]
        att_acc = part if att_acc is None else att_acc + part
    # TODO(synk): for S >~ 1k replace the per-head [S,S] score matrix with a
    # flash-style online softmax over KV tiles (m/l/acc VMEM scratch).

    att = att_acc + bo_ref[0]

    # dropout1 == identity (inference)

    # residual + LayerNorm 1 (f32)
    h1 = att + x
    mu1 = jnp.mean(h1, axis=-1, keepdims=True)
    var1 = jnp.mean((h1 - mu1) ** 2, axis=-1, keepdims=True)
    x1 = (h1 - mu1) * jax.lax.rsqrt(var1 + LN_EPS) * g1_ref[0] + be1_ref[0]

    # feed-forward MLP: Linear -> ReLU -> Linear (bf16 MXU operands, f32 acc)
    ff = jnp.dot(x1.astype(jnp.bfloat16), wff1_ref[0],
                 preferred_element_type=jnp.float32) + bff1_ref[0]
    ff = jnp.maximum(ff, 0.0)
    ff = jnp.dot(ff.astype(jnp.bfloat16), wff2_ref[0],
                 preferred_element_type=jnp.float32) + bff2_ref[0]
    # TODO(synk): at large D/d_ff on v7x (64 MiB VMEM) K/N-tile wff1/wff2 with
    # an inner reduction grid axis instead of streaming whole weight slabs.

    # dropout2 == identity (inference)

    # residual + LayerNorm 2 (f32) -> carried / final output
    h2 = ff + x1
    mu2 = jnp.mean(h2, axis=-1, keepdims=True)
    var2 = jnp.mean((h2 - mu2) ** 2, axis=-1, keepdims=True)
    out = (h2 - mu2) * jax.lax.rsqrt(var2 + LN_EPS) * g2_ref[0] + be2_ref[0]
    o_ref[...] = out.astype(o_ref.dtype)


def _stack_params(params):
    """Stack per-layer params along a leading layer axis; fuse Q|K|V; weights -> bf16."""
    layers = params["layers"]

    def stack(name, dtype=None):
        arr = jnp.stack([lp[name] for lp in layers], axis=0)
        return arr.astype(dtype) if dtype is not None else arr

    wqkv = jnp.stack(
        [jnp.concatenate([lp["wq"], lp["wk"], lp["wv"]], axis=1) for lp in layers],
        axis=0).astype(jnp.bfloat16)
    bqkv = jnp.stack(
        [jnp.concatenate([lp["bq"], lp["bk"], lp["bv"]], axis=1) for lp in layers],
        axis=0)
    return dict(
        wqkv=wqkv, bqkv=bqkv,
        wo=stack("wo", jnp.bfloat16), bo=stack("bo"),
        g1=stack("g1"), be1=stack("be1"),
        wff1=stack("wff1", jnp.bfloat16), bff1=stack("bff1"),
        wff2=stack("wff2", jnp.bfloat16), bff2=stack("bff2"),
        g2=stack("g2"), be2=stack("be2"),
    )


def _pick_batch_tile(B, S, target_rows=1024):
    """Largest batch-divisor whose row count is sublane-legal and <= target."""
    best = None
    for cand in range(1, B + 1):
        if B % cand != 0:
            continue
        rows = cand * S
        legal = (rows % 8 == 0) or (cand == B)   # (8,128) rule: div by 8 or full
        if legal and rows <= target_rows:
            best = cand
    return best if best is not None else B


def encoder_only_transformer(x, params, num_heads, batch_tile=None):
    """x: [B, S, D] float32.  Whole N-layer encoder in one pallas_call."""
    B, S, D = x.shape
    assert D % num_heads == 0
    sp = _stack_params(params)
    n_layers = sp["wqkv"].shape[0]
    d_ff = sp["wff1"].shape[2]

    if batch_tile is None:
        batch_tile = _pick_batch_tile(B, S)
    assert B % batch_tile == 0
    rows = batch_tile * S
    assert rows % 8 == 0 or rows == B * S, "row tile must be sublane-aligned"
    num_tiles = B // batch_tile

    x2 = x.reshape(B * S, D)

    def wspec(r, c):
        # one layer's slab per grid step; last two block dims equal full array dims
        return pl.BlockSpec((1, r, c), lambda t, l: (l, 0, 0))

    out = pl.pallas_call(
        functools.partial(_encoder_layer_kernel,
                          num_heads=num_heads, batch_tile=batch_tile, seq=S),
        out_shape=jax.ShapeDtypeStruct((B * S, D), x.dtype),
        grid=(num_tiles, n_layers),
        in_specs=[
            pl.BlockSpec((rows, D), lambda t, l: (t, 0)),   # x tile: fetched once per tile
            wspec(D, 3 * D), wspec(1, 3 * D),               # fused QKV w, b
            wspec(D, D), wspec(1, D),                       # out-proj w, b
            wspec(1, D), wspec(1, D),                       # ln1 gamma, beta
            wspec(D, d_ff), wspec(1, d_ff),                 # ff1 w, b
            wspec(d_ff, D), wspec(1, D),                    # ff2 w, b
            wspec(1, D), wspec(1, D),                       # ln2 gamma, beta
        ],
        out_specs=pl.BlockSpec((rows, D), lambda t, l: (t, 0)),  # layer-resident activation
        scratch_shapes=[
            pltpu.VMEM((rows, 3 * D), jnp.bfloat16),        # bf16 QKV slab
        ],
        compiler_params=pltpu.CompilerParams(
            dimension_semantics=("parallel", "arbitrary"),  # tiles across TCs, layers sequential
            vmem_limit_bytes=64 * 1024 * 1024),
    )(x2,
      sp["wqkv"], sp["bqkv"], sp["wo"], sp["bo"],
      sp["g1"], sp["be1"],
      sp["wff1"], sp["bff1"], sp["wff2"], sp["bff2"],
      sp["g2"], sp["be2"])
    return out.reshape(B, S, D)


# --------- pure-JAX f32 reference (correctness sanity check) ---------
def _ref_layer(x, p, num_heads):
    B, S, D = x.shape
    dh = D // num_heads
    q = x @ p["wq"] + p["bq"][0]
    k = x @ p["wk"] + p["bk"][0]
    v = x @ p["wv"] + p["bv"][0]

    def split(t):
        return t.reshape(B, S, num_heads, dh).transpose(0, 2, 1, 3)

    qh, kh, vh = split(q), split(k), split(v)
    s = jnp.einsum("bhqd,bhkd->bhqk", qh, kh) / (dh ** 0.5)
    pmat = jax.nn.softmax(s, axis=-1)
    att = jnp.einsum("bhqk,bhkd->bhqd", pmat, vh).transpose(0, 2, 1, 3).reshape(B, S, D)
    att = att @ p["wo"] + p["bo"][0]

    def ln(z, g, b):
        mu = jnp.mean(z, axis=-1, keepdims=True)
        var = jnp.mean((z - mu) ** 2, axis=-1, keepdims=True)
        return (z - mu) / jnp.sqrt(var + LN_EPS) * g[0] + b[0]

    x1 = ln(att + x, p["g1"], p["be1"])
    ff = jnp.maximum(x1 @ p["wff1"] + p["bff1"][0], 0.0) @ p["wff2"] + p["bff2"][0]
    return ln(ff + x1, p["g2"], p["be2"])


def _ref_model(x, params, num_heads):
    for lp in params["layers"]:
        x = _ref_layer(x, lp, num_heads)
    return x


def init_params(key, d_model, h, d_ff, n_layers):
    layers = []
    for i in range(n_layers):
        ks = jax.random.split(jax.random.fold_in(key, i), 8)
        sd = 0.02
        layers.append(dict(
            wq=sd * jax.random.normal(ks[0], (d_model, d_model), jnp.float32),
            bq=jnp.zeros((1, d_model), jnp.float32),
            wk=sd * jax.random.normal(ks[1], (d_model, d_model), jnp.float32),
            bk=jnp.zeros((1, d_model), jnp.float32),
            wv=sd * jax.random.normal(ks[2], (d_model, d_model), jnp.float32),
            bv=jnp.zeros((1, d_model), jnp.float32),
            wo=sd * jax.random.normal(ks[3], (d_model, d_model), jnp.float32),
            bo=0.01 * jax.random.normal(ks[4], (1, d_model), jnp.float32),
            g1=jnp.ones((1, d_model), jnp.float32),
            be1=jnp.zeros((1, d_model), jnp.float32),
            wff1=sd * jax.random.normal(ks[5], (d_model, d_ff), jnp.float32),
            bff1=0.01 * jax.random.normal(ks[6], (1, d_ff), jnp.float32),
            wff2=sd * jax.random.normal(ks[7], (d_ff, d_model), jnp.float32),
            bff2=jnp.zeros((1, d_model), jnp.float32),
            g2=jnp.ones((1, d_model), jnp.float32),
            be2=jnp.zeros((1, d_model), jnp.float32),
        ))
    return {"layers": layers}


if __name__ == "__main__":
    # Small config: d_model=32, heads=4, d_ff=64, N=2 layers, batch=2, seq=8.
    B, S, D, H, DFF, N = 2, 8, 32, 4, 64, 2
    key = jax.random.PRNGKey(0)
    kx, kp = jax.random.split(key)
    x = jax.random.normal(kx, (B, S, D), jnp.float32)
    params = init_params(kp, D, H, DFF, N)

    # batch_tile=1 -> two row tiles, exercising the parallel tile axis.
    out = encoder_only_transformer(x, params, H, batch_tile=1)
    out = jax.block_until_ready(out)

    ref = _ref_model(x, params, H)
    assert out.shape == (B, S, D)
    err = float(jnp.max(jnp.abs(out - ref)))
    # bf16 MXU operands + approx reciprocal vs f32 reference -> loose tolerance.
    assert err < 2e-2, f"mismatch vs JAX reference: max abs diff {err}"

    # TODO(synk): dropout implemented as identity (inference); the module's
    # trailing self.linear is defined but never applied in forward(), so omitted.
    print("KERNEL_OK")
</pallas_src>

<mosaic_0001>
module attributes {stable_mosaic.version = 11 : i64} {
  func.func @_encoder_layer_kernel(%arg0: i32, %arg1: i32, %arg2: memref<8x32xf32, #tpu.memory_space<vmem>>, %arg3: memref<1x32x96xbf16, #tpu.memory_space<vmem>>, %arg4: memref<1x1x96xf32, #tpu.memory_space<vmem>>, %arg5: memref<1x32x32xbf16, #tpu.memory_space<vmem>>, %arg6: memref<1x1x32xf32, #tpu.memory_space<vmem>>, %arg7: memref<1x1x32xf32, #tpu.memory_space<vmem>>, %arg8: memref<1x1x32xf32, #tpu.memory_space<vmem>>, %arg9: memref<1x32x64xbf16, #tpu.memory_space<vmem>>, %arg10: memref<1x1x64xf32, #tpu.memory_space<vmem>>, %arg11: memref<1x64x32xbf16, #tpu.memory_space<vmem>>, %arg12: memref<1x1x32xf32, #tpu.memory_space<vmem>>, %arg13: memref<1x1x32xf32, #tpu.memory_space<vmem>>, %arg14: memref<1x1x32xf32, #tpu.memory_space<vmem>>, %arg15: memref<8x32xf32, #tpu.memory_space<vmem>>, %arg16: memref<8x96xbf16, #tpu.memory_space<vmem>>) attributes {dimension_semantics = [#tpu.dimension_semantics<parallel>, #tpu.dimension_semantics<arbitrary>], iteration_bounds = array<i64: 2, 2>, scalar_prefetch = 0 : i64, scratch_operands = 1 : i64, tpu.core_type = #tpu.core_type<tc>, window_params = [{transform_indices = @transform_0, window_bounds = array<i64: 8, 32>}, {transform_indices = @transform_1, window_bounds = array<i64: 1, 32, 96>}, {transform_indices = @transform_2, window_bounds = array<i64: 1, 1, 96>}, {transform_indices = @transform_3, window_bounds = array<i64: 1, 32, 32>}, {transform_indices = @transform_4, window_bounds = array<i64: 1, 1, 32>}, {transform_indices = @transform_5, window_bounds = array<i64: 1, 1, 32>}, {transform_indices = @transform_6, window_bounds = array<i64: 1, 1, 32>}, {transform_indices = @transform_7, window_bounds = array<i64: 1, 32, 64>}, {transform_indices = @transform_8, window_bounds = array<i64: 1, 1, 64>}, {transform_indices = @transform_9, window_bounds = array<i64: 1, 64, 32>}, {transform_indices = @transform_10, window_bounds = array<i64: 1, 1, 32>}, {transform_indices = @transform_11, window_bounds = array<i64: 1, 1, 32>}, {transform_indices = @transform_12, window_bounds = array<i64: 1, 1, 32>}, {transform_indices = @transform_13, window_bounds = array<i64: 8, 32>}]} {
    %c0_i32 = arith.constant 0 : i32
    %0 = arith.cmpi eq, %arg1, %c0_i32 : i32
    %1 = arith.extui %0 : i1 to i32
    %c0_i32_0 = arith.constant 0 : i32
    %2 = arith.cmpi ne, %1, %c0_i32_0 : i32
    scf.if %2 {
      %c0_101 = arith.constant 0 : index
      %c0_102 = arith.constant 0 : index
      %198 = vector.load %arg2[%c0_101, %c0_102] : memref<8x32xf32, #tpu.memory_space<vmem>>, vector<8x32xf32>
      %c0_103 = arith.constant 0 : index
      %c0_104 = arith.constant 0 : index
      %199 = vector.load %arg15[%c0_103, %c0_104] : memref<8x32xf32, #tpu.memory_space<vmem>>, vector<8x32xf32>
      tpu.vector_store %arg15[%c0_103, %c0_104], %198 {strides = array<i32>} : memref<8x32xf32, #tpu.memory_space<vmem>>, vector<8x32xf32>,
    } else {
    }
    %c0 = arith.constant 0 : index
    %c0_1 = arith.constant 0 : index
    %3 = vector.load %arg15[%c0, %c0_1] : memref<8x32xf32, #tpu.memory_space<vmem>>, vector<8x32xf32>
    %4 = arith.truncf %3 : vector<8x32xf32> to vector<8x32xbf16>
    %c0_2 = arith.constant 0 : index
    %c0_3 = arith.constant 0 : index
    %c0_4 = arith.constant 0 : index
    %5 = vector.load %arg3[%c0_2, %c0_3, %c0_4] : memref<1x32x96xbf16, #tpu.memory_space<vmem>>, vector<1x32x96xbf16>
    %6 = vector.shape_cast %5 : vector<1x32x96xbf16> to vector<32x96xbf16>
    %cst = arith.constant dense<0.000000e+00> : vector<8x96xf32>
    %7 = tpu.matmul %4, %6, %cst {dimension_numbers = #tpu.dot_dimension_numbers<[1], [0], [0], [1], [0, 0, 1, 1], [], []>} : vector<8x32xbf16>, vector<32x96xbf16>, vector<8x96xf32> -> vector<8x96xf32>
    %c0_5 = arith.constant 0 : index
    %c0_6 = arith.constant 0 : index
    %c0_7 = arith.constant 0 : index
    %8 = vector.load %arg4[%c0_5, %c0_6, %c0_7] : memref<1x1x96xf32, #tpu.memory_space<vmem>>, vector<1x1x96xf32>
    %9 = vector.shape_cast %8 : vector<1x1x96xf32> to vector<1x96xf32>
    %10 = vector.broadcast %9 : vector<1x96xf32> to vector<8x96xf32>
    %11 = arith.addf %7, %10 : vector<8x96xf32>
    %12 = arith.truncf %11 : vector<8x96xf32> to vector<8x96xbf16>
    %c0_8 = arith.constant 0 : index
    %c0_9 = arith.constant 0 : index
    %13 = vector.load %arg16[%c0_8, %c0_9] : memref<8x96xbf16, #tpu.memory_space<vmem>>, vector<8x96xbf16>
    tpu.vector_store %arg16[%c0_8, %c0_9], %12 {strides = array<i32>} : memref<8x96xbf16, #tpu.memory_space<vmem>>, vector<8x96xbf16>,
    %c0_10 = arith.constant 0 : index
    %c0_11 = arith.constant 0 : index
    %14 = vector.load %arg16[%c0_10, %c0_11] : memref<8x96xbf16, #tpu.memory_space<vmem>>, vector<8x8xbf16>
    %15 = vector.shape_cast %14 : vector<8x8xbf16> to vector<1x8x8xbf16>
    %c0_12 = arith.constant 0 : index
    %c32 = arith.constant 32 : index
    %16 = vector.load %arg16[%c0_12, %c32] : memref<8x96xbf16, #tpu.memory_space<vmem>>, vector<8x8xbf16>
    %17 = vector.shape_cast %16 : vector<8x8xbf16> to vector<1x8x8xbf16>
    %c0_13 = arith.constant 0 : index
    %c64 = arith.constant 64 : index
    %18 = vector.load %arg16[%c0_13, %c64] : memref<8x96xbf16, #tpu.memory_space<vmem>>, vector<8x8xbf16>
    %19 = vector.shape_cast %18 : vector<8x8xbf16> to vector<1x8x8xbf16>
    "tpu.trace_start"() <{level = 10 : i32, message = "bqd,bkd->bqk"}> : () -> ()
    %cst_14 = arith.constant dense<0.000000e+00> : vector<1x8x8xf32>
    %20 = tpu.matmul %15, %17, %cst_14 {dimension_numbers = #tpu.dot_dimension_numbers<[2], [2], [1], [1], [0, 0, 0, 1, 1, 1], [0], [0]>} : vector<1x8x8xbf16>, vector<1x8x8xbf16>, vector<1x8x8xf32> -> vector<1x8x8xf32>
    "tpu.trace_stop"() : () -> ()
    %cst_15 = arith.constant 0.353553385 : f32
    %21 = vector.broadcast %cst_15 : f32 to vector<1x8x8xf32>
    %22 = arith.mulf %20, %21 : vector<1x8x8xf32>
    %cst_16 = arith.constant dense<0xFF800000> : vector<1x8xf32>
    %23 = vector.multi_reduction <maximumf>, %22, %cst_16 [2] : vector<1x8x8xf32> to vector<1x8xf32>
    %24 = vector.shape_cast %23 : vector<1x8xf32> to vector<1x8x1xf32>
    %25 = vector.broadcast %24 : vector<1x8x1xf32> to vector<1x8x8xf32>
    %26 = arith.subf %22, %25 : vector<1x8x8xf32>
    %27 = math.exp %26 : vector<1x8x8xf32>
    %cst_17 = arith.constant dense<0.000000e+00> : vector<1x8xf32>
    %28 = vector.multi_reduction <add>, %27, %cst_17 [2] : vector<1x8x8xf32> to vector<1x8xf32>
    %29 = vector.shape_cast %28 : vector<1x8xf32> to vector<1x8x1xf32>
    %30 = tpu.reciprocal %29 {approx = true} : vector<1x8x1xf32> -> vector<1x8x1xf32>
    %31 = vector.broadcast %30 : vector<1x8x1xf32> to vector<1x8x8xf32>
    %32 = arith.mulf %27, %31 : vector<1x8x8xf32>
    %33 = arith.truncf %32 : vector<1x8x8xf32> to vector<1x8x8xbf16>
    "tpu.trace_start"() <{level = 10 : i32, message = "bqk,bkd->bqd"}> : () -> ()
    %cst_18 = arith.constant dense<0.000000e+00> : vector<1x8x8xf32>
    %34 = tpu.matmul %33, %19, %cst_18 {dimension_numbers = #tpu.dot_dimension_numbers<[2], [1], [1], [2], [0, 0, 0, 1, 1, 2], [0], [0]>} : vector<1x8x8xbf16>, vector<1x8x8xbf16>, vector<1x8x8xf32> -> vector<1x8x8xf32>
    "tpu.trace_stop"() : () -> ()
    %35 = vector.shape_cast %34 : vector<1x8x8xf32> to vector<8x8xf32>
    %36 = arith.truncf %35 : vector<8x8xf32> to vector<8x8xbf16>
    %c0_19 = arith.constant 0 : index
    %c0_20 = arith.constant 0 : index
    %c0_21 = arith.constant 0 : index
    %37 = vector.load %arg5[%c0_19, %c0_20, %c0_21] : memref<1x32x32xbf16, #tpu.memory_space<vmem>>, vector<1x8x32xbf16>
    %38 = vector.shape_cast %37 : vector<1x8x32xbf16> to vector<8x32xbf16>
    %cst_22 = arith.constant dense<0.000000e+00> : vector<8x32xf32>
    %39 = tpu.matmul %36, %38, %cst_22 {dimension_numbers = #tpu.dot_dimension_numbers<[1], [0], [0], [1], [0, 0, 1, 1], [], []>} : vector<8x8xbf16>, vector<8x32xbf16>, vector<8x32xf32> -> vector<8x32xf32>
    %c0_23 = arith.constant 0 : index
    %c8 = arith.constant 8 : index
    %40 = vector.load %arg16[%c0_23, %c8] : memref<8x96xbf16, #tpu.memory_space<vmem>>, vector<8x8xbf16>
    %41 = vector.shape_cast %40 : vector<8x8xbf16> to vector<1x8x8xbf16>
    %c0_24 = arith.constant 0 : index
    %c40 = arith.constant 40 : index
    %42 = vector.load %arg16[%c0_24, %c40] : memref<8x96xbf16, #tpu.memory_space<vmem>>, vector<8x8xbf16>
    %43 = vector.shape_cast %42 : vector<8x8xbf16> to vector<1x8x8xbf16>
    %c0_25 = arith.constant 0 : index
    %c72 = arith.constant 72 : index
    %44 = vector.load %arg16[%c0_25, %c72] : memref<8x96xbf16, #tpu.memory_space<vmem>>, vector<8x8xbf16>
    %45 = vector.shape_cast %44 : vector<8x8xbf16> to vector<1x8x8xbf16>
    "tpu.trace_start"() <{level = 10 : i32, message = "bqd,bkd->bqk"}> : () -> ()
    %cst_26 = arith.constant dense<0.000000e+00> : vector<1x8x8xf32>
    %46 = tpu.matmul %41, %43, %cst_26 {dimension_numbers = #tpu.dot_dimension_numbers<[2], [2], [1], [1], [0, 0, 0, 1, 1, 1], [0], [0]>} : vector<1x8x8xbf16>, vector<1x8x8xbf16>, vector<1x8x8xf32> -> vector<1x8x8xf32>
    "tpu.trace_stop"() : () -> ()
    %cst_27 = arith.constant 0.353553385 : f32
    %47 = vector.broadcast %cst_27 : f32 to vector<1x8x8xf32>
    %48 = arith.mulf %46, %47 : vector<1x8x8xf32>
    %cst_28 = arith.constant dense<0xFF800000> : vector<1x8xf32>
    %49 = vector.multi_reduction <maximumf>, %48, %cst_28 [2] : vector<1x8x8xf32> to vector<1x8xf32>
    %50 = vector.shape_cast %49 : vector<1x8xf32> to vector<1x8x1xf32>
    %51 = vector.broadcast %50 : vector<1x8x1xf32> to vector<1x8x8xf32>
    %52 = arith.subf %48, %51 : vector<1x8x8xf32>
    %53 = math.exp %52 : vector<1x8x8xf32>
    %cst_29 = arith.constant dense<0.000000e+00> : vector<1x8xf32>
    %54 = vector.multi_reduction <add>, %53, %cst_29 [2] : vector<1x8x8xf32> to vector<1x8xf32>
    %55 = vector.shape_cast %54 : vector<1x8xf32> to vector<1x8x1xf32>
    %56 = tpu.reciprocal %55 {approx = true} : vector<1x8x1xf32> -> vector<1x8x1xf32>
    %57 = vector.broadcast %56 : vector<1x8x1xf32> to vector<1x8x8xf32>
    %58 = arith.mulf %53, %57 : vector<1x8x8xf32>
    %59 = arith.truncf %58 : vector<1x8x8xf32> to vector<1x8x8xbf16>
    "tpu.trace_start"() <{level = 10 : i32, message = "bqk,bkd->bqd"}> : () -> ()
    %cst_30 = arith.constant dense<0.000000e+00> : vector<1x8x8xf32>
    %60 = tpu.matmul %59, %45, %cst_30 {dimension_numbers = #tpu.dot_dimension_numbers<[2], [1], [1], [2], [0, 0, 0, 1, 1, 2], [0], [0]>} : vector<1x8x8xbf16>, vector<1x8x8xbf16>, vector<1x8x8xf32> -> vector<1x8x8xf32>
    "tpu.trace_stop"() : () -> ()
    %61 = vector.shape_cast %60 : vector<1x8x8xf32> to vector<8x8xf32>
    %62 = arith.truncf %61 : vector<8x8xf32> to vector<8x8xbf16>
    %c0_31 = arith.constant 0 : index
    %c8_32 = arith.constant 8 : index
    %c0_33 = arith.constant 0 : index
    %63 = vector.load %arg5[%c0_31, %c8_32, %c0_33] : memref<1x32x32xbf16, #tpu.memory_space<vmem>>, vector<1x8x32xbf16>
    %64 = vector.shape_cast %63 : vector<1x8x32xbf16> to vector<8x32xbf16>
    %cst_34 = arith.constant dense<0.000000e+00> : vector<8x32xf32>
    %65 = tpu.matmul %62, %64, %cst_34 {dimension_numbers = #tpu.dot_dimension_numbers<[1], [0], [0], [1], [0, 0, 1, 1], [], []>} : vector<8x8xbf16>, vector<8x32xbf16>, vector<8x32xf32> -> vector<8x32xf32>
    %66 = arith.addf %39, %65 : vector<8x32xf32>
    %c0_35 = arith.constant 0 : index
    %c16 = arith.constant 16 : index
    %67 = vector.load %arg16[%c0_35, %c16] : memref<8x96xbf16, #tpu.memory_space<vmem>>, vector<8x8xbf16>
    %68 = vector.shape_cast %67 : vector<8x8xbf16> to vector<1x8x8xbf16>
    %c0_36 = arith.constant 0 : index
    %c48 = arith.constant 48 : index
    %69 = vector.load %arg16[%c0_36, %c48] : memref<8x96xbf16, #tpu.memory_space<vmem>>, vector<8x8xbf16>
    %70 = vector.shape_cast %69 : vector<8x8xbf16> to vector<1x8x8xbf16>
    %c0_37 = arith.constant 0 : index
    %c80 = arith.constant 80 : index
    %71 = vector.load %arg16[%c0_37, %c80] : memref<8x96xbf16, #tpu.memory_space<vmem>>, vector<8x8xbf16>
    %72 = vector.shape_cast %71 : vector<8x8xbf16> to vector<1x8x8xbf16>
    "tpu.trace_start"() <{level = 10 : i32, message = "bqd,bkd->bqk"}> : () -> ()
    %cst_38 = arith.constant dense<0.000000e+00> : vector<1x8x8xf32>
    %73 = tpu.matmul %68, %70, %cst_38 {dimension_numbers = #tpu.dot_dimension_numbers<[2], [2], [1], [1], [0, 0, 0, 1, 1, 1], [0], [0]>} : vector<1x8x8xbf16>, vector<1x8x8xbf16>, vector<1x8x8xf32> -> vector<1x8x8xf32>
    "tpu.trace_stop"() : () -> ()
    %cst_39 = arith.constant 0.353553385 : f32
    %74 = vector.broadcast %cst_39 : f32 to vector<1x8x8xf32>
    %75 = arith.mulf %73, %74 : vector<1x8x8xf32>
    %cst_40 = arith.constant dense<0xFF800000> : vector<1x8xf32>
    %76 = vector.multi_reduction <maximumf>, %75, %cst_40 [2] : vector<1x8x8xf32> to vector<1x8xf32>
    %77 = vector.shape_cast %76 : vector<1x8xf32> to vector<1x8x1xf32>
    %78 = vector.broadcast %77 : vector<1x8x1xf32> to vector<1x8x8xf32>
    %79 = arith.subf %75, %78 : vector<1x8x8xf32>
    %80 = math.exp %79 : vector<1x8x8xf32>
    %cst_41 = arith.constant dense<0.000000e+00> : vector<1x8xf32>
    %81 = vector.multi_reduction <add>, %80, %cst_41 [2] : vector<1x8x8xf32> to vector<1x8xf32>
    %82 = vector.shape_cast %81 : vector<1x8xf32> to vector<1x8x1xf32>
    %83 = tpu.reciprocal %82 {approx = true} : vector<1x8x1xf32> -> vector<1x8x1xf32>
    %84 = vector.broadcast %83 : vector<1x8x1xf32> to vector<1x8x8xf32>
    %85 = arith.mulf %80, %84 : vector<1x8x8xf32>
    %86 = arith.truncf %85 : vector<1x8x8xf32> to vector<1x8x8xbf16>
    "tpu.trace_start"() <{level = 10 : i32, message = "bqk,bkd->bqd"}> : () -> ()
    %cst_42 = arith.constant dense<0.000000e+00> : vector<1x8x8xf32>
    %87 = tpu.matmul %86, %72, %cst_42 {dimension_numbers = #tpu.dot_dimension_numbers<[2], [1], [1], [2], [0, 0, 0, 1, 1, 2], [0], [0]>} : vector<1x8x8xbf16>, vector<1x8x8xbf16>, vector<1x8x8xf32> -> vector<1x8x8xf32>
    "tpu.trace_stop"() : () -> ()
    %88 = vector.shape_cast %87 : vector<1x8x8xf32> to vector<8x8xf32>
    %89 = arith.truncf %88 : vector<8x8xf32> to vector<8x8xbf16>
    %c0_43 = arith.constant 0 : index
    %c16_44 = arith.constant 16 : index
    %c0_45 = arith.constant 0 : index
    %90 = vector.load %arg5[%c0_43, %c16_44, %c0_45] : memref<1x32x32xbf16, #tpu.memory_space<vmem>>, vector<1x8x32xbf16>
    %91 = vector.shape_cast %90 : vector<1x8x32xbf16> to vector<8x32xbf16>
    %cst_46 = arith.constant dense<0.000000e+00> : vector<8x32xf32>
    %92 = tpu.matmul %89, %91, %cst_46 {dimension_numbers = #tpu.dot_dimension_numbers<[1], [0], [0], [1], [0, 0, 1, 1], [], []>} : vector<8x8xbf16>, vector<8x32xbf16>, vector<8x32xf32> -> vector<8x32xf32>
    %93 = arith.addf %66, %92 : vector<8x32xf32>
    %c0_47 = arith.constant 0 : index
    %c24 = arith.constant 24 : index
    %94 = vector.load %arg16[%c0_47, %c24] : memref<8x96xbf16, #tpu.memory_space<vmem>>, vector<8x8xbf16>
    %95 = vector.shape_cast %94 : vector<8x8xbf16> to vector<1x8x8xbf16>
    %c0_48 = arith.constant 0 : index
    %c56 = arith.constant 56 : index
    %96 = vector.load %arg16[%c0_48, %c56] : memref<8x96xbf16, #tpu.memory_space<vmem>>, vector<8x8xbf16>
    %97 = vector.shape_cast %96 : vector<8x8xbf16> to vector<1x8x8xbf16>
    %c0_49 = arith.constant 0 : index
    %c88 = arith.constant 88 : index
    %98 = vector.load %arg16[%c0_49, %c88] : memref<8x96xbf16, #tpu.memory_space<vmem>>, vector<8x8xbf16>
    %99 = vector.shape_cast %98 : vector<8x8xbf16> to vector<1x8x8xbf16>
    "tpu.trace_start"() <{level = 10 : i32, message = "bqd,bkd->bqk"}> : () -> ()
    %cst_50 = arith.constant dense<0.000000e+00> : vector<1x8x8xf32>
    %100 = tpu.matmul %95, %97, %cst_50 {dimension_numbers = #tpu.dot_dimension_numbers<[2], [2], [1], [1], [0, 0, 0, 1, 1, 1], [0], [0]>} : vector<1x8x8xbf16>, vector<1x8x8xbf16>, vector<1x8x8xf32> -> vector<1x8x8xf32>
    "tpu.trace_stop"() : () -> ()
    %cst_51 = arith.constant 0.353553385 : f32
    %101 = vector.broadcast %cst_51 : f32 to vector<1x8x8xf32>
    %102 = arith.mulf %100, %101 : vector<1x8x8xf32>
    %cst_52 = arith.constant dense<0xFF800000> : vector<1x8xf32>
    %103 = vector.multi_reduction <maximumf>, %102, %cst_52 [2] : vector<1x8x8xf32> to vector<1x8xf32>
    %104 = vector.shape_cast %103 : vector<1x8xf32> to vector<1x8x1xf32>
    %105 = vector.broadcast %104 : vector<1x8x1xf32> to vector<1x8x8xf32>
    %106 = arith.subf %102, %105 : vector<1x8x8xf32>
    %107 = math.exp %106 : vector<1x8x8xf32>
    %cst_53 = arith.constant dense<0.000000e+00> : vector<1x8xf32>
    %108 = vector.multi_reduction <add>, %107, %cst_53 [2] : vector<1x8x8xf32> to vector<1x8xf32>
    %109 = vector.shape_cast %108 : vector<1x8xf32> to vector<1x8x1xf32>
    %110 = tpu.reciprocal %109 {approx = true} : vector<1x8x1xf32> -> vector<1x8x1xf32>
    %111 = vector.broadcast %110 : vector<1x8x1xf32> to vector<1x8x8xf32>
    %112 = arith.mulf %107, %111 : vector<1x8x8xf32>
    %113 = arith.truncf %112 : vector<1x8x8xf32> to vector<1x8x8xbf16>
    "tpu.trace_start"() <{level = 10 : i32, message = "bqk,bkd->bqd"}> : () -> ()
    %cst_54 = arith.constant dense<0.000000e+00> : vector<1x8x8xf32>
    %114 = tpu.matmul %113, %99, %cst_54 {dimension_numbers = #tpu.dot_dimension_numbers<[2], [1], [1], [2], [0, 0, 0, 1, 1, 2], [0], [0]>} : vector<1x8x8xbf16>, vector<1x8x8xbf16>, vector<1x8x8xf32> -> vector<1x8x8xf32>
    "tpu.trace_stop"() : () -> ()
    %115 = vector.shape_cast %114 : vector<1x8x8xf32> to vector<8x8xf32>
    %116 = arith.truncf %115 : vector<8x8xf32> to vector<8x8xbf16>
    %c0_55 = arith.constant 0 : index
    %c24_56 = arith.constant 24 : index
    %c0_57 = arith.constant 0 : index
    %117 = vector.load %arg5[%c0_55, %c24_56, %c0_57] : memref<1x32x32xbf16, #tpu.memory_space<vmem>>, vector<1x8x32xbf16>
    %118 = vector.shape_cast %117 : vector<1x8x32xbf16> to vector<8x32xbf16>
    %cst_58 = arith.constant dense<0.000000e+00> : vector<8x32xf32>
    %119 = tpu.matmul %116, %118, %cst_58 {dimension_numbers = #tpu.dot_dimension_numbers<[1], [0], [0], [1], [0, 0, 1, 1], [], []>} : vector<8x8xbf16>, vector<8x32xbf16>, vector<8x32xf32> -> vector<8x32xf32>
    %120 = arith.addf %93, %119 : vector<8x32xf32>
    %c0_59 = arith.constant 0 : index
    %c0_60 = arith.constant 0 : index
    %c0_61 = arith.constant 0 : index
    %121 = vector.load %arg6[%c0_59, %c0_60, %c0_61] : memref<1x1x32xf32, #tpu.memory_space<vmem>>, vector<1x1x32xf32>
    %122 = vector.shape_cast %121 : vector<1x1x32xf32> to vector<1x32xf32>
    %123 = vector.broadcast %122 : vector<1x32xf32> to vector<8x32xf32>
    %124 = arith.addf %120, %123 : vector<8x32xf32>
    %125 = arith.addf %124, %3 : vector<8x32xf32>
    %cst_62 = arith.constant dense<0.000000e+00> : vector<8xf32>
    %126 = vector.multi_reduction <add>, %125, %cst_62 [1] : vector<8x32xf32> to vector<8xf32>
    %127 = vector.shape_cast %126 : vector<8xf32> to vector<8x1xf32>
    %cst_63 = arith.constant 3.200000e+01 : f32
    %128 = vector.broadcast %cst_63 : f32 to vector<8x1xf32>
    %129 = arith.divf %127, %128 : vector<8x1xf32>
    %130 = vector.broadcast %129 : vector<8x1xf32> to vector<8x32xf32>
    %131 = arith.subf %125, %130 : vector<8x32xf32>
    %132 = arith.mulf %131, %131 : vector<8x32xf32>
    %cst_64 = arith.constant dense<0.000000e+00> : vector<8xf32>
    %133 = vector.multi_reduction <add>, %132, %cst_64 [1] : vector<8x32xf32> to vector<8xf32>
    %134 = vector.shape_cast %133 : vector<8xf32> to vector<8x1xf32>
    %cst_65 = arith.constant 3.200000e+01 : f32
    %135 = vector.broadcast %cst_65 : f32 to vector<8x1xf32>
    %136 = arith.divf %134, %135 : vector<8x1xf32>
    %137 = vector.broadcast %129 : vector<8x1xf32> to vector<8x32xf32>
    %138 = arith.subf %125, %137 : vector<8x32xf32>
    %cst_66 = arith.constant 9.99999974E-6 : f32
    %139 = vector.broadcast %cst_66 : f32 to vector<8x1xf32>
    %140 = arith.addf %136, %139 : vector<8x1xf32>
    %141 = math.rsqrt %140 : vector<8x1xf32>
    %142 = vector.broadcast %141 : vector<8x1xf32> to vector<8x32xf32>
    %143 = arith.mulf %138, %142 : vector<8x32xf32>
    %c0_67 = arith.constant 0 : index
    %c0_68 = arith.constant 0 : index
    %c0_69 = arith.constant 0 : index
    %144 = vector.load %arg7[%c0_67, %c0_68, %c0_69] : memref<1x1x32xf32, #tpu.memory_space<vmem>>, vector<1x1x32xf32>
    %145 = vector.shape_cast %144 : vector<1x1x32xf32> to vector<1x32xf32>
    %146 = vector.broadcast %145 : vector<1x32xf32> to vector<8x32xf32>
    %147 = arith.mulf %143, %146 : vector<8x32xf32>
    %c0_70 = arith.constant 0 : index
    %c0_71 = arith.constant 0 : index
    %c0_72 = arith.constant 0 : index
    %148 = vector.load %arg8[%c0_70, %c0_71, %c0_72] : memref<1x1x32xf32, #tpu.memory_space<vmem>>, vector<1x1x32xf32>
    %149 = vector.shape_cast %148 : vector<1x1x32xf32> to vector<1x32xf32>
    %150 = vector.broadcast %149 : vector<1x32xf32> to vector<8x32xf32>
    %151 = arith.addf %147, %150 : vector<8x32xf32>
    %152 = arith.truncf %151 : vector<8x32xf32> to vector<8x32xbf16>
    %c0_73 = arith.constant 0 : index
    %c0_74 = arith.constant 0 : index
    %c0_75 = arith.constant 0 : index
    %153 = vector.load %arg9[%c0_73, %c0_74, %c0_75] : memref<1x32x64xbf16, #tpu.memory_space<vmem>>, vector<1x32x64xbf16>
    %154 = vector.shape_cast %153 : vector<1x32x64xbf16> to vector<32x64xbf16>
    %cst_76 = arith.constant dense<0.000000e+00> : vector<8x64xf32>
    %155 = tpu.matmul %152, %154, %cst_76 {dimension_numbers = #tpu.dot_dimension_numbers<[1], [0], [0], [1], [0, 0, 1, 1], [], []>} : vector<8x32xbf16>, vector<32x64xbf16>, vector<8x64xf32> -> vector<8x64xf32>
    %c0_77 = arith.constant 0 : index
    %c0_78 = arith.constant 0 : index
    %c0_79 = arith.constant 0 : index
    %156 = vector.load %arg10[%c0_77, %c0_78, %c0_79] : memref<1x1x64xf32, #tpu.memory_space<vmem>>, vector<1x1x64xf32>
    %157 = vector.shape_cast %156 : vector<1x1x64xf32> to vector<1x64xf32>
    %158 = vector.broadcast %157 : vector<1x64xf32> to vector<8x64xf32>
    %159 = arith.addf %155, %158 : vector<8x64xf32>
    %cst_80 = arith.constant 0.000000e+00 : f32
    %160 = vector.broadcast %cst_80 : f32 to vector<8x64xf32>
    %161 = arith.maximumf %159, %160 : vector<8x64xf32>
    %162 = arith.truncf %161 : vector<8x64xf32> to vector<8x64xbf16>
    %c0_81 = arith.constant 0 : index
    %c0_82 = arith.constant 0 : index
    %c0_83 = arith.constant 0 : index
    %163 = vector.load %arg11[%c0_81, %c0_82, %c0_83] : memref<1x64x32xbf16, #tpu.memory_space<vmem>>, vector<1x64x32xbf16>
    %164 = vector.shape_cast %163 : vector<1x64x32xbf16> to vector<64x32xbf16>
    %cst_84 = arith.constant dense<0.000000e+00> : vector<8x32xf32>
    %165 = tpu.matmul %162, %164, %cst_84 {dimension_numbers = #tpu.dot_dimension_numbers<[1], [0], [0], [1], [0, 0, 1, 1], [], []>} : vector<8x64xbf16>, vector<64x32xbf16>, vector<8x32xf32> -> vector<8x32xf32>
    %c0_85 = arith.constant 0 : index
    %c0_86 = arith.constant 0 : index
    %c0_87 = arith.constant 0 : index
    %166 = vector.load %arg12[%c0_85, %c0_86, %c0_87] : memref<1x1x32xf32, #tpu.memory_space<vmem>>, vector<1x1x32xf32>
    %167 = vector.shape_cast %166 : vector<1x1x32xf32> to vector<1x32xf32>
    %168 = vector.broadcast %167 : vector<1x32xf32> to vector<8x32xf32>
    %169 = arith.addf %165, %168 : vector<8x32xf32>
    %170 = arith.addf %169, %151 : vector<8x32xf32>
    %cst_88 = arith.constant dense<0.000000e+00> : vector<8xf32>
    %171 = vector.multi_reduction <add>, %170, %cst_88 [1] : vector<8x32xf32> to vector<8xf32>
    %172 = vector.shape_cast %171 : vector<8xf32> to vector<8x1xf32>
    %cst_89 = arith.constant 3.200000e+01 : f32
    %173 = vector.broadcast %cst_89 : f32 to vector<8x1xf32>
    %174 = arith.divf %172, %173 : vector<8x1xf32>
    %175 = vector.broadcast %174 : vector<8x1xf32> to vector<8x32xf32>
    %176 = arith.subf %170, %175 : vector<8x32xf32>
    %177 = arith.mulf %176, %176 : vector<8x32xf32>
    %cst_90 = arith.constant dense<0.000000e+00> : vector<8xf32>
    %178 = vector.multi_reduction <add>, %177, %cst_90 [1] : vector<8x32xf32> to vector<8xf32>
    %179 = vector.shape_cast %178 : vector<8xf32> to vector<8x1xf32>
    %cst_91 = arith.constant 3.200000e+01 : f32
    %180 = vector.broadcast %cst_91 : f32 to vector<8x1xf32>
    %181 = arith.divf %179, %180 : vector<8x1xf32>
    %182 = vector.broadcast %174 : vector<8x1xf32> to vector<8x32xf32>
    %183 = arith.subf %170, %182 : vector<8x32xf32>
    %cst_92 = arith.constant 9.99999974E-6 : f32
    %184 = vector.broadcast %cst_92 : f32 to vector<8x1xf32>
    %185 = arith.addf %181, %184 : vector<8x1xf32>
    %186 = math.rsqrt %185 : vector<8x1xf32>
    %187 = vector.broadcast %186 : vector<8x1xf32> to vector<8x32xf32>
    %188 = arith.mulf %183, %187 : vector<8x32xf32>
    %c0_93 = arith.constant 0 : index
    %c0_94 = arith.constant 0 : index
    %c0_95 = arith.constant 0 : index
    %189 = vector.load %arg13[%c0_93, %c0_94, %c0_95] : memref<1x1x32xf32, #tpu.memory_space<vmem>>, vector<1x1x32xf32>
    %190 = vector.shape_cast %189 : vector<1x1x32xf32> to vector<1x32xf32>
    %191 = vector.broadcast %190 : vector<1x32xf32> to vector<8x32xf32>
    %192 = arith.mulf %188, %191 : vector<8x32xf32>
    %c0_96 = arith.constant 0 : index
    %c0_97 = arith.constant 0 : index
    %c0_98 = arith.constant 0 : index
    %193 = vector.load %arg14[%c0_96, %c0_97, %c0_98] : memref<1x1x32xf32, #tpu.memory_space<vmem>>, vector<1x1x32xf32>
    %194 = vector.shape_cast %193 : vector<1x1x32xf32> to vector<1x32xf32>
    %195 = vector.broadcast %194 : vector<1x32xf32> to vector<8x32xf32>
    %196 = arith.addf %192, %195 : vector<8x32xf32>
    %c0_99 = arith.constant 0 : index
    %c0_100 = arith.constant 0 : index
    %197 = vector.load %arg15[%c0_99, %c0_100] : memref<8x32xf32, #tpu.memory_space<vmem>>, vector<8x32xf32>
    tpu.vector_store %arg15[%c0_99, %c0_100], %196 {strides = array<i32>} : memref<8x32xf32, #tpu.memory_space<vmem>>, vector<8x32xf32>,
    return
  }
  func.func @transform_0(%arg0: i32, %arg1: i32) -> (i32, i32) {
    %c0_i32 = arith.constant 0 : i32
    %c0_i32_0 = arith.constant 0 : i32
    return %arg0, %c0_i32 : i32, i32
  }
  func.func @transform_1(%arg0: i32, %arg1: i32) -> (i32, i32, i32) {
    %c0_i32 = arith.constant 0 : i32
    %c0_i32_0 = arith.constant 0 : i32
    %c0_i32_1 = arith.constant 0 : i32
    return %arg1, %c0_i32, %c0_i32_0 : i32, i32, i32
  }
  func.func @transform_2(%arg0: i32, %arg1: i32) -> (i32, i32, i32) {
    %c0_i32 = arith.constant 0 : i32
    %c0_i32_0 = arith.constant 0 : i32
    %c0_i32_1 = arith.constant 0 : i32
    return %arg1, %c0_i32, %c0_i32_0 : i32, i32, i32
  }
  func.func @transform_3(%arg0: i32, %arg1: i32) -> (i32, i32, i32) {
    %c0_i32 = arith.constant 0 : i32
    %c0_i32_0 = arith.constant 0 : i32
    %c0_i32_1 = arith.constant 0 : i32
    return %arg1, %c0_i32, %c0_i32_0 : i32, i32, i32
  }
  func.func @transform_4(%arg0: i32, %arg1: i32) -> (i32, i32, i32) {
    %c0_i32 = arith.constant 0 : i32
    %c0_i32_0 = arith.constant 0 : i32
    %c0_i32_1 = arith.constant 0 : i32
    return %arg1, %c0_i32, %c0_i32_0 : i32, i32, i32
  }
  func.func @transform_5(%arg0: i32, %arg1: i32) -> (i32, i32, i32) {
    %c0_i32 = arith.constant 0 : i32
    %c0_i32_0 = arith.constant 0 : i32
    %c0_i32_1 = arith.constant 0 : i32
    return %arg1, %c0_i32, %c0_i32_0 : i32, i32, i32
  }
  func.func @transform_6(%arg0: i32, %arg1: i32) -> (i32, i32, i32) {
    %c0_i32 = arith.constant 0 : i32
    %c0_i32_0 = arith.constant 0 : i32
    %c0_i32_1 = arith.constant 0 : i32
    return %arg1, %c0_i32, %c0_i32_0 : i32, i32, i32
  }
  func.func @transform_7(%arg0: i32, %arg1: i32) -> (i32, i32, i32) {
    %c0_i32 = arith.constant 0 : i32
    %c0_i32_0 = arith.constant 0 : i32
    %c0_i32_1 = arith.constant 0 : i32
    return %arg1, %c0_i32, %c0_i32_0 : i32, i32, i32
  }
  func.func @transform_8(%arg0: i32, %arg1: i32) -> (i32, i32, i32) {
    %c0_i32 = arith.constant 0 : i32
    %c0_i32_0 = arith.constant 0 : i32
    %c0_i32_1 = arith.constant 0 : i32
    return %arg1, %c0_i32, %c0_i32_0 : i32, i32, i32
  }
  func.func @transform_9(%arg0: i32, %arg1: i32) -> (i32, i32, i32) {
    %c0_i32 = arith.constant 0 : i32
    %c0_i32_0 = arith.constant 0 : i32
    %c0_i32_1 = arith.constant 0 : i32
    return %arg1, %c0_i32, %c0_i32_0 : i32, i32, i32
  }
  func.func @transform_10(%arg0: i32, %arg1: i32) -> (i32, i32, i32) {
    %c0_i32 = arith.constant 0 : i32
    %c0_i32_0 = arith.constant 0 : i32
    %c0_i32_1 = arith.constant 0 : i32
    return %arg1, %c0_i32, %c0_i32_0 : i32, i32, i32
  }
  func.func @transform_11(%arg0: i32, %arg1: i32) -> (i32, i32, i32) {
    %c0_i32 = arith.constant 0 : i32
    %c0_i32_0 = arith.constant 0 : i32
    %c0_i32_1 = arith.constant 0 : i32
    return %arg1, %c0_i32, %c0_i32_0 : i32, i32, i32
  }
  func.func @transform_12(%arg0: i32, %arg1: i32) -> (i32, i32, i32) {
    %c0_i32 = arith.constant 0 : i32
    %c0_i32_0 = arith.constant 0 : i32
    %c0_i32_1 = arith.constant 0 : i32
    return %arg1, %c0_i32, %c0_i32_0 : i32, i32, i32
  }
  func.func @transform_13(%arg0: i32, %arg1: i32) -> (i32, i32) {
    %c0_i32 = arith.constant 0 : i32
    %c0_i32_0 = arith.constant 0 : i32
    return %arg0, %c0_i32 : i32, i32
  }
}

</mosaic_0001>

<llo_original>
// kernel: tpu_custom_call.1
$region0: #{tpu_custom_call.1}
  #allocation0 [shape = 'u32[]', space=smem, size = 0x4, offset = 0x4, fixed_abs, tag = 'smem constant byte address 0x4 - core index']
  #allocation1 [shape = 'u32[144,128]{1,0:T(1,128)}', space=vmem, size = 0x12000, scoped, tag = 'internal scratch']
  #allocation2 [shape = 'bf16[8,96]{1,0:T(8,128)(2,1)}', space=vmem, size = 0x800, scoped, tag = 'scratch operand']
  %s0 = inlined_call_operand.hbm [shape: f32[16,32], index: 0, kind: input, shape index: {}]
  %s1 = inlined_call_operand.hbm [shape: bf16[2,32,96], index: 1, kind: input, shape index: {}]
  %s2 = inlined_call_operand.hbm [shape: f32[2,1,96], index: 2, kind: input, shape index: {}]
  %s3 = inlined_call_operand.hbm [shape: bf16[2,32,32], index: 3, kind: input, shape index: {}]
  %s4 = inlined_call_operand.hbm [shape: f32[2,1,32], index: 4, kind: input, shape index: {}]
  %s5 = inlined_call_operand.hbm [shape: f32[2,1,32], index: 5, kind: input, shape index: {}]
  %s6 = inlined_call_operand.hbm [shape: f32[2,1,32], index: 6, kind: input, shape index: {}]
  %s7 = inlined_call_operand.hbm [shape: bf16[2,32,64], index: 7, kind: input, shape index: {}]
  %s8 = inlined_call_operand.hbm [shape: f32[2,1,64], index: 8, kind: input, shape index: {}]
  %s9 = inlined_call_operand.hbm [shape: bf16[2,64,32], index: 9, kind: input, shape index: {}]
  %s10 = inlined_call_operand.hbm [shape: f32[2,1,32], index: 10, kind: input, shape index: {}]
  %s11 = inlined_call_operand.hbm [shape: f32[2,1,32], index: 11, kind: input, shape index: {}]
  %s12 = inlined_call_operand.hbm [shape: f32[2,1,32], index: 12, kind: input, shape index: {}]
  %s13 = inlined_call_operand.hbm [shape: f32[16,32], index: 13, kind: output, shape index: {}]
  %s14 = sld [smem:[#allocation0]]
  $region141: #{tpu_custom_call.1} parent=0
    _
  %s16 = ssub.s32 1, %s14
  %s17 = scalar_select 0, %s16, %s14
  $region1: #{tpu_custom_call.1} parent=0
    #allocation3 [shape = 'u8[8192]{0}', space=vmem, size = 0x2000, scoped, tag = 'input window, operand 0']
    #allocation4 [shape = 's32[2]{0}', space=sflag, size = 0x8, scoped, tag = 'scoped memory for tpu_custom_call.1']
    #allocation5 [shape = 's32[2]{0}', space=sflag, size = 0x8, scoped, tag = 'scoped memory for tpu_custom_call.1']
    #allocation6 [shape = 'u8[16384]{0}', space=vmem, size = 0x4000, scoped, tag = 'input window, operand 1']
    #allocation7 [shape = 's32[2]{0}', space=sflag, size = 0x8, scoped, tag = 'scoped memory for tpu_custom_call.1']
    #allocation8 [shape = 'u8[1024]{0}', space=vmem, size = 0x400, scoped, tag = 'input window, operand 2']
    #allocation9 [shape = 'u8[16384]{0}', space=vmem, size = 0x4000, scoped, tag = 'input window, operand 3']
    #allocation10 [shape = 's32[2]{0}', space=sflag, size = 0x8, scoped, tag = 'scoped memory for tpu_custom_call.1']
    #allocation11 [shape = 'u8[1024]{0}', space=vmem, size = 0x400, scoped, tag = 'input window, operand 4']
    #allocation12 [shape = 'u8[1024]{0}', space=vmem, size = 0x400, scoped, tag = 'input window, operand 5']
    #allocation13 [shape = 's32[2]{0}', space=sflag, size = 0x8, scoped, tag = 'scoped memory for tpu_custom_call.1']
    #allocation14 [shape = 'u8[1024]{0}', space=vmem, size = 0x400, scoped, tag = 'input window, operand 6']
    #allocation15 [shape = 'u8[16384]{0}', space=vmem, size = 0x4000, scoped, tag = 'input window, operand 7']
    #allocation16 [shape = 's32[2]{0}', space=sflag, size = 0x8, scoped, tag = 'scoped memory for tpu_custom_call.1']
    #allocation17 [shape = 'u8[1024]{0}', space=vmem, size = 0x400, scoped, tag = 'input window, operand 8']
    #allocation18 [shape = 'u8[32768]{0}', space=vmem, size = 0x8000, scoped, tag = 'input window, operand 9']
    #allocation19 [shape = 's32[2]{0}', space=sflag, size = 0x8, scoped, tag = 'scoped memory for tpu_custom_call.1']
    #allocation20 [shape = 'u8[1024]{0}', space=vmem, size = 0x400, scoped, tag = 'input window, operand 10']
    #allocation21 [shape = 'u8[1024]{0}', space=vmem, size = 0x400, scoped, tag = 'input window, operand 11']
    #allocation22 [shape = 's32[2]{0}', space=sflag, size = 0x8, scoped, tag = 'scoped memory for tpu_custom_call.1']
    #allocation23 [shape = 'u8[1024]{0}', space=vmem, size = 0x400, scoped, tag = 'input window, operand 12']
    #allocation24 [shape = 'u8[8192]{0}', space=vmem, size = 0x2000, scoped, tag = 'output window, operand 0']
    %18 = vsyncpa [#allocation4], 0
    %s19 = scalar_lea.sflag [#allocation4], 1
    %20 = vsyncpa %s19, 0
    %21 = vsyncpa [#allocation7], 0
    %s22 = scalar_lea.sflag [#allocation7], 1
    %23 = vsyncpa %s22, 0
    %24 = vsyncpa [#allocation10], 0
    %s25 = scalar_lea.sflag [#allocation10], 1
    %26 = vsyncpa %s25, 0
    %27 = vsyncpa [#allocation13], 0
    %s28 = scalar_lea.sflag [#allocation13], 1
    %29 = vsyncpa %s28, 0
    %30 = vsyncpa [#allocation16], 0
    %s31 = scalar_lea.sflag [#allocation16], 1
    %32 = vsyncpa %s31, 0
    %33 = vsyncpa [#allocation19], 0
    %s34 = scalar_lea.sflag [#allocation19], 1
    %35 = vsyncpa %s34, 0
    %36 = vsyncpa [#allocation22], 0
    %s37 = scalar_lea.sflag [#allocation22], 1
    %38 = vsyncpa %s37, 0
    %39 = vsyncpa [#allocation5], 0
    %s40 = scalar_lea.sflag [#allocation5], 1
    %41 = vsyncpa %s40, 0
    loop: start=0, step=1, limit=6
    $region2: #{tpu_custom_call.1} parent=1 // loop_pre_header
      _
    $region3: #{tpu_custom_call.1} parent=1 // loop_header
      %s43 = sphi 0, %s47
      %p44 = scmp.ge.s32.totalorder %s43, 6
      %s50 = sphi 0, %s62
      %s51 = sphi 0, %s58
      %s52 = sphi 0, %s50
      %s53 = sphi 0, %s51
      %s54 = sphi 0, %s52
      %s55 = sphi 0, %s53
      %s65 = sphi 0, %s67
      %s68 = sphi 0, %s65
      %s69 = sphi 0, %s68
      %s85 = sphi 0, %s69
      %s91 = sphi 0, %s93
      %s94 = sphi 0, %s91
      %s95 = sphi 0, %s94
      %s111 = sphi 0, %s95
      %s117 = sphi 0, %s119
      %s120 = sphi 0, %s117
      %s121 = sphi 0, %s120
      %s137 = sphi 0, %s121
      %s143 = sphi 0, %s145
      %s146 = sphi 0, %s143
      %s147 = sphi 0, %s146
      %s163 = sphi 0, %s147
      %s169 = sphi 0, %s171
      %s172 = sphi 0, %s169
      %s173 = sphi 0, %s172
      %s189 = sphi 0, %s173
      %s195 = sphi 0, %s197
      %s198 = sphi 0, %s195
      %s199 = sphi 0, %s198
      %s215 = sphi 0, %s199
      %s221 = sphi 0, %s223
      %s224 = sphi 0, %s221
      %s225 = sphi 0, %s224
      %s241 = sphi 0, %s225
      %s247 = sphi 0, %s249
      %s250 = sphi 0, %s247
      %s251 = sphi 0, %s250
      %s267 = sphi 0, %s251
      %s273 = sphi 0, %s275
      %s276 = sphi 0, %s273
      %s277 = sphi 0, %s276
      %s293 = sphi 0, %s277
      %s299 = sphi 0, %s301
      %s302 = sphi 0, %s299
      %s303 = sphi 0, %s302
      %s319 = sphi 0, %s303
      %s325 = sphi 0, %s327
      %s328 = sphi 0, %s325
      %s329 = sphi 0, %s328
      %s345 = sphi 0, %s329
      %s351 = sphi 0, %s353
      %s354 = sphi 0, %s351
      %s355 = sphi 0, %s354
      %s371 = sphi 0, %s355
      %s377 = sphi 0, %s379
      %s380 = sphi 0, %s377
      %s381 = sphi 0, %s380
      %s397 = sphi 0, %s381
      %s403 = sphi 0, %s405
      %s406 = sphi 0, %s403
      %s407 = sphi 0, %s406
      %s423 = sphi 0, %s407
    $region4: #{tpu_custom_call.1} parent=1 // loop_header_branch
      %46 = sbr.rel (%p44) target = $region8
    $region5: #{tpu_custom_call.1} parent=1 // loop_body
      %s48 = ssub.s32 %s43, 1
      %s49 = ssub.s32 %s43, 2
      %s56 = sadd.s32 1, %s51
      %p57 = scmp.ge.s32.totalorder %s56, 2
      %s58 = scalar_select %p57, 0, %s56
      %s59 = sadd.s32 1, %s50
      %s60 = scalar_select %p57, %s59, %s50
      %p61 = scmp.ge.s32.totalorder %s60, 2
      %s62 = scalar_select %p61, 0, %s60
      %s63 = ssub.s32 %s50, %s62
      %p64 = scmp.eq.s32.totalorder %s63, 0
      %s66 = sadd.s32 %s65, 1
      %s67 = scalar_select %p64, %s65, %s66
      %p70 = pneg %p64
      %p71 = scmp.eq.s32.totalorder %s43, 3
      %p72 = por %p70, %p71
      %p73 = scmp.ne.s32.totalorder %s65, %s68
      %p74 = scmp.eq.s32.totalorder %s43, 0
      %p75 = por %p73, %p74
      %p76 = scmp.ne.s32.totalorder %s65, %s68
      %p77 = scmp.eq.s32.totalorder %s48, 3
      %p78 = por %p76, %p77
      %p79 = scmp.ne.s32.totalorder %s68, %s69
      %p80 = scmp.eq.s32.totalorder %s48, 0
      %p81 = por %p79, %p80
      %p82 = scmp.ne.s32.totalorder %s68, %s69
      %p83 = scmp.eq.s32.totalorder %s49, 3
      %p84 = por %p82, %p83
      %p86 = scmp.ne.s32.totalorder %s69, %s85
      %p87 = scmp.eq.s32.totalorder %s49, 0
      %p88 = por %p86, %p87
      %s89 = ssub.s32 %s51, %s58
      %p90 = scmp.eq.s32.totalorder %s89, 0
      %s92 = sadd.s32 %s91, 1
      %s93 = scalar_select %p90, %s91, %s92
      %p96 = pneg %p90
      %p97 = scmp.eq.s32.totalorder %s43, 3
      %p98 = por %p96, %p97
      %p99 = scmp.ne.s32.totalorder %s91, %s94
      %p100 = scmp.eq.s32.totalorder %s43, 0
      %p101 = por %p99, %p100
      %p102 = scmp.ne.s32.totalorder %s91, %s94
      %p103 = scmp.eq.s32.totalorder %s48, 3
      %p104 = por %p102, %p103
      %p105 = scmp.ne.s32.totalorder %s94, %s95
      %p106 = scmp.eq.s32.totalorder %s48, 0
      %p107 = por %p105, %p106
      %p108 = scmp.ne.s32.totalorder %s94, %s95
      %p109 = scmp.eq.s32.totalorder %s49, 3
      %p110 = por %p108, %p109
      %p112 = scmp.ne.s32.totalorder %s95, %s111
      %p113 = scmp.eq.s32.totalorder %s49, 0
      %p114 = por %p112, %p113
      %s115 = ssub.s32 %s51, %s58
      %p116 = scmp.eq.s32.totalorder %s115, 0
      %s118 = sadd.s32 %s117, 1
      %s119 = scalar_select %p116, %s117, %s118
      %p122 = pneg %p116
      %p123 = scmp.eq.s32.totalorder %s43, 3
      %p124 = por %p122, %p123
      %p125 = scmp.ne.s32.totalorder %s117, %s120
      %p126 = scmp.eq.s32.totalorder %s43, 0
      %p127 = por %p125, %p126
      %p128 = scmp.ne.s32.totalorder %s117, %s120
      %p129 = scmp.eq.s32.totalorder %s48, 3
      %p130 = por %p128, %p129
      %p131 = scmp.ne.s32.totalorder %s120, %s121
      %p132 = scmp.eq.s32.totalorder %s48, 0
      %p133 = por %p131, %p132
      %p134 = scmp.ne.s32.totalorder %s120, %s121
      %p135 = scmp.eq.s32.totalorder %s49, 3
      %p136 = por %p134, %p135
      %p138 = scmp.ne.s32.totalorder %s121, %s137
      %p139 = scmp.eq.s32.totalorder %s49, 0
      %p140 = por %p138, %p139
      %s141 = ssub.s32 %s51, %s58
      %p142 = scmp.eq.s32.totalorder %s141, 0
      %s144 = sadd.s32 %s143, 1
      %s145 = scalar_select %p142, %s143, %s144
      %p148 = pneg %p142
      %p149 = scmp.eq.s32.totalorder %s43, 3
      %p150 = por %p148, %p149
      %p151 = scmp.ne.s32.totalorder %s143, %s146
      %p152 = scmp.eq.s32.totalorder %s43, 0
      %p153 = por %p151, %p152
      %p154 = scmp.ne.s32.totalorder %s143, %s146
      %p155 = scmp.eq.s32.totalorder %s48, 3
      %p156 = por %p154, %p155
      %p157 = scmp.ne.s32.totalorder %s146, %s147
      %p158 = scmp.eq.s32.totalorder %s48, 0
      %p159 = por %p157, %p158
      %p160 = scmp.ne.s32.totalorder %s146, %s147
      %p161 = scmp.eq.s32.totalorder %s49, 3
      %p162 = por %p160, %p161
      %p164 = scmp.ne.s32.totalorder %s147, %s163
      %p165 = scmp.eq.s32.totalorder %s49, 0
      %p166 = por %p164, %p165
      %s167 = ssub.s32 %s51, %s58
      %p168 = scmp.eq.s32.totalorder %s167, 0
      %s170 = sadd.s32 %s169, 1
      %s171 = scalar_select %p168, %s169, %s170
      %p174 = pneg %p168
      %p175 = scmp.eq.s32.totalorder %s43, 3
      %p176 = por %p174, %p175
      %p177 = scmp.ne.s32.totalorder %s169, %s172
      %p178 = scmp.eq.s32.totalorder %s43, 0
      %p179 = por %p177, %p178
      %p180 = scmp.ne.s32.totalorder %s169, %s172
      %p181 = scmp.eq.s32.totalorder %s48, 3
      %p182 = por %p180, %p181
      %p183 = scmp.ne.s32.totalorder %s172, %s173
      %p184 = scmp.eq.s32.totalorder %s48, 0
      %p185 = por %p183, %p184
      %p186 = scmp.ne.s32.totalorder %s172, %s173
      %p187 = scmp.eq.s32.totalorder %s49, 3
      %p188 = por %p186, %p187
      %p190 = scmp.ne.s32.totalorder %s173, %s189
      %p191 = scmp.eq.s32.totalorder %s49, 0
      %p192 = por %p190, %p191
      %s193 = ssub.s32 %s51, %s58
      %p194 = scmp.eq.s32.totalorder %s193, 0
      %s196 = sadd.s32 %s195, 1
      %s197 = scalar_select %p194, %s195, %s196
      %p200 = pneg %p194
      %p201 = scmp.eq.s32.totalorder %s43, 3
      %p202 = por %p200, %p201
      %p203 = scmp.ne.s32.totalorder %s195, %s198
      %p204 = scmp.eq.s32.totalorder %s43, 0
      %p205 = por %p203, %p204
      %p206 = scmp.ne.s32.totalorder %s195, %s198
      %p207 = scmp.eq.s32.totalorder %s48, 3
      %p208 = por %p206, %p207
      %p209 = scmp.ne.s32.totalorder %s198, %s199
      %p210 = scmp.eq.s32.totalorder %s48, 0
      %p211 = por %p209, %p210
      %p212 = scmp.ne.s32.totalorder %s198, %s199
      %p213 = scmp.eq.s32.totalorder %s49, 3
      %p214 = por %p212, %p213
      %p216 = scmp.ne.s32.totalorder %s199, %s215
      %p217 = scmp.eq.s32.totalorder %s49, 0
      %p218 = por %p216, %p217
      %s219 = ssub.s32 %s51, %s58
      %p220 = scmp.eq.s32.totalorder %s219, 0
      %s222 = sadd.s32 %s221, 1
      %s223 = scalar_select %p220, %s221, %s222
      %p226 = pneg %p220
      %p227 = scmp.eq.s32.totalorder %s43, 3
      %p228 = por %p226, %p227
      %p229 = scmp.ne.s32.totalorder %s221, %s224
      %p230 = scmp.eq.s32.totalorder %s43, 0
      %p231 = por %p229, %p230
      %p232 = scmp.ne.s32.totalorder %s221, %s224
      %p233 = scmp.eq.s32.totalorder %s48, 3
      %p234 = por %p232, %p233
      %p235 = scmp.ne.s32.totalorder %s224, %s225
      %p236 = scmp.eq.s32.totalorder %s48, 0
      %p237 = por %p235, %p236
      %p238 = scmp.ne.s32.totalorder %s224, %s225
      %p239 = scmp.eq.s32.totalorder %s49, 3
      %p240 = por %p238, %p239
      %p242 = scmp.ne.s32.totalorder %s225, %s241
      %p243 = scmp.eq.s32.totalorder %s49, 0
      %p244 = por %p242, %p243
      %s245 = ssub.s32 %s51, %s58
      %p246 = scmp.eq.s32.totalorder %s245, 0
      %s248 = sadd.s32 %s247, 1
      %s249 = scalar_select %p246, %s247, %s248
      %p252 = pneg %p246
      %p253 = scmp.eq.s32.totalorder %s43, 3
      %p254 = por %p252, %p253
      %p255 = scmp.ne.s32.totalorder %s247, %s250
      %p256 = scmp.eq.s32.totalorder %s43, 0
      %p257 = por %p255, %p256
      %p258 = scmp.ne.s32.totalorder %s247, %s250
      %p259 = scmp.eq.s32.totalorder %s48, 3
      %p260 = por %p258, %p259
      %p261 = scmp.ne.s32.totalorder %s250, %s251
      %p262 = scmp.eq.s32.totalorder %s48, 0
      %p263 = por %p261, %p262
      %p264 = scmp.ne.s32.totalorder %s250, %s251
      %p265 = scmp.eq.s32.totalorder %s49, 3
      %p266 = por %p264, %p265
      %p268 = scmp.ne.s32.totalorder %s251, %s267
      %p269 = scmp.eq.s32.totalorder %s49, 0
      %p270 = por %p268, %p269
      %s271 = ssub.s32 %s51, %s58
      %p272 = scmp.eq.s32.totalorder %s271, 0
      %s274 = sadd.s32 %s273, 1
      %s275 = scalar_select %p272, %s273, %s274
      %p278 = pneg %p272
      %p279 = scmp.eq.s32.totalorder %s43, 3
      %p280 = por %p278, %p279
      %p281 = scmp.ne.s32.totalorder %s273, %s276
      %p282 = scmp.eq.s32.totalorder %s43, 0
      %p283 = por %p281, %p282
      %p284 = scmp.ne.s32.totalorder %s273, %s276
      %p285 = scmp.eq.s32.totalorder %s48, 3
      %p286 = por %p284, %p285
      %p287 = scmp.ne.s32.totalorder %s276, %s277
      %p288 = scmp.eq.s32.totalorder %s48, 0
      %p289 = por %p287, %p288
      %p290 = scmp.ne.s32.totalorder %s276, %s277
      %p291 = scmp.eq.s32.totalorder %s49, 3
      %p292 = por %p290, %p291
      %p294 = scmp.ne.s32.totalorder %s277, %s293
      %p295 = scmp.eq.s32.totalorder %s49, 0
      %p296 = por %p294, %p295
      %s297 = ssub.s32 %s51, %s58
      %p298 = scmp.eq.s32.totalorder %s297, 0
      %s300 = sadd.s32 %s299, 1
      %s301 = scalar_select %p298, %s299, %s300
      %p304 = pneg %p298
      %p305 = scmp.eq.s32.totalorder %s43, 3
      %p306 = por %p304, %p305
      %p307 = scmp.ne.s32.totalorder %s299, %s302
      %p308 = scmp.eq.s32.totalorder %s43, 0
      %p309 = por %p307, %p308
      %p310 = scmp.ne.s32.totalorder %s299, %s302
      %p311 = scmp.eq.s32.totalorder %s48, 3
      %p312 = por %p310, %p311
      %p313 = scmp.ne.s32.totalorder %s302, %s303
      %p314 = scmp.eq.s32.totalorder %s48, 0
      %p315 = por %p313, %p314
      %p316 = scmp.ne.s32.totalorder %s302, %s303
      %p317 = scmp.eq.s32.totalorder %s49, 3
      %p318 = por %p316, %p317
      %p320 = scmp.ne.s32.totalorder %s303, %s319
      %p321 = scmp.eq.s32.totalorder %s49, 0
      %p322 = por %p320, %p321
      %s323 = ssub.s32 %s51, %s58
      %p324 = scmp.eq.s32.totalorder %s323, 0
      %s326 = sadd.s32 %s325, 1
      %s327 = scalar_select %p324, %s325, %s326
      %p330 = pneg %p324
      %p331 = scmp.eq.s32.totalorder %s43, 3
      %p332 = por %p330, %p331
      %p333 = scmp.ne.s32.totalorder %s325, %s328
      %p334 = scmp.eq.s32.totalorder %s43, 0
      %p335 = por %p333, %p334
      %p336 = scmp.ne.s32.totalorder %s325, %s328
      %p337 = scmp.eq.s32.totalorder %s48, 3
      %p338 = por %p336, %p337
      %p339 = scmp.ne.s32.totalorder %s328, %s329
      %p340 = scmp.eq.s32.totalorder %s48, 0
      %p341 = por %p339, %p340
      %p342 = scmp.ne.s32.totalorder %s328, %s329
      %p343 = scmp.eq.s32.totalorder %s49, 3
      %p344 = por %p342, %p343
      %p346 = scmp.ne.s32.totalorder %s329, %s345
      %p347 = scmp.eq.s32.totalorder %s49, 0
      %p348 = por %p346, %p347
      %s349 = ssub.s32 %s51, %s58
      %p350 = scmp.eq.s32.totalorder %s349, 0
      %s352 = sadd.s32 %s351, 1
      %s353 = scalar_select %p350, %s351, %s352
      %p356 = pneg %p350
      %p357 = scmp.eq.s32.totalorder %s43, 3
      %p358 = por %p356, %p357
      %p359 = scmp.ne.s32.totalorder %s351, %s354
      %p360 = scmp.eq.s32.totalorder %s43, 0
      %p361 = por %p359, %p360
      %p362 = scmp.ne.s32.totalorder %s351, %s354
      %p363 = scmp.eq.s32.totalorder %s48, 3
      %p364 = por %p362, %p363
      %p365 = scmp.ne.s32.totalorder %s354, %s355
      %p366 = scmp.eq.s32.totalorder %s48, 0
      %p367 = por %p365, %p366
      %p368 = scmp.ne.s32.totalorder %s354, %s355
      %p369 = scmp.eq.s32.totalorder %s49, 3
      %p370 = por %p368, %p369
      %p372 = scmp.ne.s32.totalorder %s355, %s371
      %p373 = scmp.eq.s32.totalorder %s49, 0
      %p374 = por %p372, %p373
      %s375 = ssub.s32 %s51, %s58
      %p376 = scmp.eq.s32.totalorder %s375, 0
      %s378 = sadd.s32 %s377, 1
      %s379 = scalar_select %p376, %s377, %s378
      %p382 = pneg %p376
      %p383 = scmp.eq.s32.totalorder %s43, 3
      %p384 = por %p382, %p383
      %p385 = scmp.ne.s32.totalorder %s377, %s380
      %p386 = scmp.eq.s32.totalorder %s43, 0
      %p387 = por %p385, %p386
      %p388 = scmp.ne.s32.totalorder %s377, %s380
      %p389 = scmp.eq.s32.totalorder %s48, 3
      %p390 = por %p388, %p389
      %p391 = scmp.ne.s32.totalorder %s380, %s381
      %p392 = scmp.eq.s32.totalorder %s48, 0
      %p393 = por %p391, %p392
      %p394 = scmp.ne.s32.totalorder %s380, %s381
      %p395 = scmp.eq.s32.totalorder %s49, 3
      %p396 = por %p394, %p395
      %p398 = scmp.ne.s32.totalorder %s381, %s397
      %p399 = scmp.eq.s32.totalorder %s49, 0
      %p400 = por %p398, %p399
      %s401 = ssub.s32 %s50, %s62
      %p402 = scmp.eq.s32.totalorder %s401, 0
      %s404 = sadd.s32 %s403, 1
      %s405 = scalar_select %p402, %s403, %s404
      %p408 = pneg %p402
      %p409 = scmp.eq.s32.totalorder %s43, 3
      %p410 = por %p408, %p409
      %p411 = scmp.ne.s32.totalorder %s403, %s406
      %p412 = scmp.eq.s32.totalorder %s43, 0
      %p413 = por %p411, %p412
      %p414 = scmp.ne.s32.totalorder %s403, %s406
      %p415 = scmp.eq.s32.totalorder %s48, 3
      %p416 = por %p414, %p415
      %p417 = scmp.ne.s32.totalorder %s406, %s407
      %p418 = scmp.eq.s32.totalorder %s48, 0
      %p419 = por %p417, %p418
      %p420 = scmp.ne.s32.totalorder %s406, %s407
      %p421 = scmp.eq.s32.totalorder %s49, 3
      %p422 = por %p420, %p421
      %p424 = scmp.ne.s32.totalorder %s407, %s423
      %p425 = scmp.eq.s32.totalorder %s49, 0
      %p426 = por %p424, %p425
      %p427 = scmp.le.s32.totalorder 1, %s43
      %p428 = scmp.lt.s32.totalorder %s43, 5
      %p429 = pnand %p427, %p428
      %p430 = pneg %p429
      // Predicated region
      $region9: #{tpu_custom_call.1} parent=5 // pred_check
        _
      $region10: #{tpu_custom_call.1} parent=5 // pred_check_branch
        %432 = sbr.rel (%p429) target = $region12
      $region11: #{tpu_custom_call.1} parent=5 // pred_region
        %s433 = ssub.s32 %s43, 1
      $region12: #{tpu_custom_call.1} parent=5 // pred_fallthru
        _
      %p434 = scmp.lt.s32.totalorder %s43, 4
      // Predicated region
      $region13: #{tpu_custom_call.1} parent=5 // pred_check
        %p435 = pneg %p434
      $region14: #{tpu_custom_call.1} parent=5 // pred_check_branch
        %437 = sbr.rel (%p435) target = $region16
      $region15: #{tpu_custom_call.1} parent=5 // pred_region
        // Predicated region
        $region17: #{tpu_custom_call.1} parent=15 // pred_check
          %p438 = pneg %p75
        $region18: #{tpu_custom_call.1} parent=15 // pred_check_branch
          %440 = sbr.rel (%p438) target = $region20
        $region19: #{tpu_custom_call.1} parent=15 // pred_region
          %s441 = sand.u32 %s65, 1
          %s442 = scalar_lea.sflag [#allocation4], %s441
          %s443 = sand.u32 %s65, 1
          %s444 = smul.addr %s443, 8
          %s445 = scalar_lea.vmem [#allocation3], %s444
          %s447 = ssub.s32 128, 128
          %448 = vsyncadd %s442, %s447
          %s449 = smul.addr %s50, 128
          %s450 = scalar_lea.hbm %s0, %s449
          %s452 = sshll.u32 %s445, 4
          %s453 = int_to_ptr.vmem [resolvable:$true] %s452
          %455 = dma.hbm_to_vmem [thread:$0]  %s450, 128, %s453, %s442
        $region20: #{tpu_custom_call.1} parent=15 // pred_fallthru
          _
        // Predicated region
        $region21: #{tpu_custom_call.1} parent=15 // pred_check
          %p456 = pneg %p101
        $region22: #{tpu_custom_call.1} parent=15 // pred_check_branch
          %458 = sbr.rel (%p456) target = $region24
        $region23: #{tpu_custom_call.1} parent=15 // pred_region
          %s459 = sand.u32 %s43, 1
          %s460 = scalar_lea.sflag [#allocation7], %s459
          %s461 = sand.u32 %s91, 1
          %s462 = smul.addr %s461, 16
          %s463 = scalar_lea.vmem [#allocation6], %s462
          %s465 = ssub.s32 256, 256
          %466 = vsyncadd %s460, %s465
          %s467 = smul.addr %s51, 4
          %s468 = smul.addr %s467, 64
          %s469 = scalar_lea.hbm %s1, %s468
          %s470 = sshll.u32 %s463, 4
          %s471 = int_to_ptr.vmem [resolvable:$true] %s470
          %476 = dma.hbm_to_vmem [thread:$0]  %s469, 256, %s471, %s460, 64, 64, 4
        $region24: #{tpu_custom_call.1} parent=15 // pred_fallthru
          _
        // Predicated region
        $region25: #{tpu_custom_call.1} parent=15 // pred_check
          %p477 = pneg %p127
        $region26: #{tpu_custom_call.1} parent=15 // pred_check_branch
          %479 = sbr.rel (%p477) target = $region28
        $region27: #{tpu_custom_call.1} parent=15 // pred_region
          %s480 = sand.u32 %s43, 1
          %s481 = scalar_lea.sflag [#allocation7], %s480
          %s482 = sand.u32 %s117, 1
          %s483 = scalar_lea.vmem [#allocation8], %s482
          %s485 = ssub.s32 16, 16
          %486 = vsyncadd %s481, %s485
          %s487 = smul.addr %s51, 16
          %s488 = scalar_lea.hbm %s2, %s487
          %s490 = sshll.u32 %s483, 4
          %s491 = int_to_ptr.vmem [resolvable:$true] %s490
          %493 = dma.hbm_to_vmem [thread:$0]  %s488, 16, %s491, %s481
        $region28: #{tpu_custom_call.1} parent=15 // pred_fallthru
          _
        // Predicated region
        $region29: #{tpu_custom_call.1} parent=15 // pred_check
          %p494 = pneg %p153
        $region30: #{tpu_custom_call.1} parent=15 // pred_check_branch
          %496 = sbr.rel (%p494) target = $region32
        $region31: #{tpu_custom_call.1} parent=15 // pred_region
          %s497 = sand.u32 %s43, 1
          %s498 = scalar_lea.sflag [#allocation10], %s497
          %s499 = sand.u32 %s143, 1
          %s500 = smul.addr %s499, 16
          %s501 = scalar_lea.vmem [#allocation9], %s500
          %s503 = ssub.s32 256, 256
          %504 = vsyncadd %s498, %s503
          %s505 = smul.addr %s51, 4
          %s506 = smul.addr %s505, 64
          %s507 = scalar_lea.hbm %s3, %s506
          %s508 = sshll.u32 %s501, 4
          %s509 = int_to_ptr.vmem [resolvable:$true] %s508
          %514 = dma.hbm_to_vmem [thread:$0]  %s507, 256, %s509, %s498, 64, 64, 4
        $region32: #{tpu_custom_call.1} parent=15 // pred_fallthru
          _
        // Predicated region
        $region33: #{tpu_custom_call.1} parent=15 // pred_check
          %p515 = pneg %p179
        $region34: #{tpu_custom_call.1} parent=15 // pred_check_branch
          %517 = sbr.rel (%p515) target = $region36
        $region35: #{tpu_custom_call.1} parent=15 // pred_region
          %s518 = sand.u32 %s43, 1
          %s519 = scalar_lea.sflag [#allocation10], %s518
          %s520 = sand.u32 %s169, 1
          %s521 = scalar_lea.vmem [#allocation11], %s520
          %s523 = ssub.s32 16, 16
          %524 = vsyncadd %s519, %s523
          %s525 = smul.addr %s51, 16
          %s526 = scalar_lea.hbm %s4, %s525
          %s528 = sshll.u32 %s521, 4
          %s529 = int_to_ptr.vmem [resolvable:$true] %s528
          %531 = dma.hbm_to_vmem [thread:$0]  %s526, 16, %s529, %s519
        $region36: #{tpu_custom_call.1} parent=15 // pred_fallthru
          _
        // Predicated region
        $region37: #{tpu_custom_call.1} parent=15 // pred_check
          %p532 = pneg %p205
        $region38: #{tpu_custom_call.1} parent=15 // pred_check_branch
          %534 = sbr.rel (%p532) target = $region40
        $region39: #{tpu_custom_call.1} parent=15 // pred_region
          %s535 = sand.u32 %s43, 1
          %s536 = scalar_lea.sflag [#allocation13], %s535
          %s537 = sand.u32 %s195, 1
          %s538 = scalar_lea.vmem [#allocation12], %s537
          %s540 = ssub.s32 16, 16
          %541 = vsyncadd %s536, %s540
          %s542 = smul.addr %s51, 16
          %s543 = scalar_lea.hbm %s5, %s542
          %s545 = sshll.u32 %s538, 4
          %s546 = int_to_ptr.vmem [resolvable:$true] %s545
          %548 = dma.hbm_to_vmem [thread:$0]  %s543, 16, %s546, %s536
        $region40: #{tpu_custom_call.1} parent=15 // pred_fallthru
          _
        // Predicated region
        $region41: #{tpu_custom_call.1} parent=15 // pred_check
          %p549 = pneg %p231
        $region42: #{tpu_custom_call.1} parent=15 // pred_check_branch
          %551 = sbr.rel (%p549) target = $region44
        $region43: #{tpu_custom_call.1} parent=15 // pred_region
          %s552 = sand.u32 %s43, 1
          %s553 = scalar_lea.sflag [#allocation13], %s552
          %s554 = sand.u32 %s221, 1
          %s555 = scalar_lea.vmem [#allocation14], %s554
          %s557 = ssub.s32 16, 16
          %558 = vsyncadd %s553, %s557
          %s559 = smul.addr %s51, 16
          %s560 = scalar_lea.hbm %s6, %s559
          %s562 = sshll.u32 %s555, 4
          %s563 = int_to_ptr.vmem [resolvable:$true] %s562
          %565 = dma.hbm_to_vmem [thread:$0]  %s560, 16, %s563, %s553
        $region44: #{tpu_custom_call.1} parent=15 // pred_fallthru
          _
        // Predicated region
        $region45: #{tpu_custom_call.1} parent=15 // pred_check
          %p566 = pneg %p257
        $region46: #{tpu_custom_call.1} parent=15 // pred_check_branch
          %568 = sbr.rel (%p566) target = $region48
        $region47: #{tpu_custom_call.1} parent=15 // pred_region
          %s569 = sand.u32 %s43, 1
          %s570 = scalar_lea.sflag [#allocation16], %s569
          %s571 = sand.u32 %s247, 1
          %s572 = smul.addr %s571, 16
          %s573 = scalar_lea.vmem [#allocation15], %s572
          %s575 = ssub.s32 256, 256
          %576 = vsyncadd %s570, %s575
          %s577 = smul.addr %s51, 4
          %s578 = smul.addr %s577, 64
          %s579 = scalar_lea.hbm %s7, %s578
          %s580 = sshll.u32 %s573, 4
          %s581 = int_to_ptr.vmem [resolvable:$true] %s580
          %586 = dma.hbm_to_vmem [thread:$0]  %s579, 256, %s581, %s570, 64, 64, 4
        $region48: #{tpu_custom_call.1} parent=15 // pred_fallthru
          _
        // Predicated region
        $region49: #{tpu_custom_call.1} parent=15 // pred_check
          %p587 = pneg %p283
        $region50: #{tpu_custom_call.1} parent=15 // pred_check_branch
          %589 = sbr.rel (%p587) target = $region52
        $region51: #{tpu_custom_call.1} parent=15 // pred_region
          %s590 = sand.u32 %s43, 1
          %s591 = scalar_lea.sflag [#allocation16], %s590
          %s592 = sand.u32 %s273, 1
          %s593 = scalar_lea.vmem [#allocation17], %s592
          %s595 = ssub.s32 16, 16
          %596 = vsyncadd %s591, %s595
          %s597 = smul.addr %s51, 16
          %s598 = scalar_lea.hbm %s8, %s597
          %s600 = sshll.u32 %s593, 4
          %s601 = int_to_ptr.vmem [resolvable:$true] %s600
          %603 = dma.hbm_to_vmem [thread:$0]  %s598, 16, %s601, %s591
        $region52: #{tpu_custom_call.1} parent=15 // pred_fallthru
          _
        // Predicated region
        $region53: #{tpu_custom_call.1} parent=15 // pred_check
          %p604 = pneg %p309
        $region54: #{tpu_custom_call.1} parent=15 // pred_check_branch
          %606 = sbr.rel (%p604) target = $region56
        $region55: #{tpu_custom_call.1} parent=15 // pred_region
          %s607 = sand.u32 %s43, 1
          %s608 = scalar_lea.sflag [#allocation19], %s607
          %s609 = sand.u32 %s299, 1
          %s610 = smul.addr %s609, 32
          %s611 = scalar_lea.vmem [#allocation18], %s610
          %s613 = ssub.s32 512, 512
          %614 = vsyncadd %s608, %s613
          %s615 = smul.addr %s51, 8
          %s616 = smul.addr %s615, 64
          %s617 = scalar_lea.hbm %s9, %s616
          %s618 = sshll.u32 %s611, 4
          %s619 = int_to_ptr.vmem [resolvable:$true] %s618
          %624 = dma.hbm_to_vmem [thread:$0]  %s617, 512, %s619, %s608, 64, 64, 4
        $region56: #{tpu_custom_call.1} parent=15 // pred_fallthru
          _
        // Predicated region
        $region57: #{tpu_custom_call.1} parent=15 // pred_check
          %p625 = pneg %p335
        $region58: #{tpu_custom_call.1} parent=15 // pred_check_branch
          %627 = sbr.rel (%p625) target = $region60
        $region59: #{tpu_custom_call.1} parent=15 // pred_region
          %s628 = sand.u32 %s43, 1
          %s629 = scalar_lea.sflag [#allocation19], %s628
          %s630 = sand.u32 %s325, 1
          %s631 = scalar_lea.vmem [#allocation20], %s630
          %s633 = ssub.s32 16, 16
          %634 = vsyncadd %s629, %s633
          %s635 = smul.addr %s51, 16
          %s636 = scalar_lea.hbm %s10, %s635
          %s638 = sshll.u32 %s631, 4
          %s639 = int_to_ptr.vmem [resolvable:$true] %s638
          %641 = dma.hbm_to_vmem [thread:$0]  %s636, 16, %s639, %s629
        $region60: #{tpu_custom_call.1} parent=15 // pred_fallthru
          _
        // Predicated region
        $region61: #{tpu_custom_call.1} parent=15 // pred_check
          %p642 = pneg %p361
        $region62: #{tpu_custom_call.1} parent=15 // pred_check_branch
          %644 = sbr.rel (%p642) target = $region64
        $region63: #{tpu_custom_call.1} parent=15 // pred_region
          %s645 = sand.u32 %s43, 1
          %s646 = scalar_lea.sflag [#allocation22], %s645
          %s647 = sand.u32 %s351, 1
          %s648 = scalar_lea.vmem [#allocation21], %s647
          %s650 = ssub.s32 16, 16
          %651 = vsyncadd %s646, %s650
          %s652 = smul.addr %s51, 16
          %s653 = scalar_lea.hbm %s11, %s652
          %s655 = sshll.u32 %s648, 4
          %s656 = int_to_ptr.vmem [resolvable:$true] %s655
          %658 = dma.hbm_to_vmem [thread:$0]  %s653, 16, %s656, %s646
        $region64: #{tpu_custom_call.1} parent=15 // pred_fallthru
          _
        // Predicated region
        $region65: #{tpu_custom_call.1} parent=15 // pred_check
          %p659 = pneg %p387
        $region66: #{tpu_custom_call.1} parent=15 // pred_check_branch
          %661 = sbr.rel (%p659) target = $region68
        $region67: #{tpu_custom_call.1} parent=15 // pred_region
          %s662 = sand.u32 %s43, 1
          %s663 = scalar_lea.sflag [#allocation22], %s662
          %s664 = sand.u32 %s377, 1
          %s665 = scalar_lea.vmem [#allocation23], %s664
          %s667 = ssub.s32 16, 16
          %668 = vsyncadd %s663, %s667
          %s669 = smul.addr %s51, 16
          %s670 = scalar_lea.hbm %s12, %s669
          %s672 = sshll.u32 %s665, 4
          %s673 = int_to_ptr.vmem [resolvable:$true] %s672
          %675 = dma.hbm_to_vmem [thread:$0]  %s670, 16, %s673, %s663
        $region68: #{tpu_custom_call.1} parent=15 // pred_fallthru
          _
      $region16: #{tpu_custom_call.1} parent=5 // pred_fallthru
        _
      %p676 = scmp.le.s32.totalorder 1, %s43
      %p677 = scmp.lt.s32.totalorder %s43, 5
      %p678 = pnand %p676, %p677
      %p679 = pneg %p678
      // Predicated region
      $region69: #{tpu_custom_call.1} parent=5 // pred_check
        _
      $region70: #{tpu_custom_call.1} parent=5 // pred_check_branch
        %681 = sbr.rel (%p678) target = $region72
      $region71: #{tpu_custom_call.1} parent=5 // pred_region
        %s682 = ssub.s32 %s43, 1
        %s683 = sand.u32 %s68, 1
        %s684 = scalar_lea.sflag [#allocation4], %s683
        %s685 = sand.u32 %s68, 1
        %s686 = smul.addr %s685, 8
        %s687 = scalar_lea.vmem [#allocation3], %s686
        // Predicated region
        $region73: #{tpu_custom_call.1} parent=71 // pred_check
          %p688 = pneg %p81
        $region74: #{tpu_custom_call.1} parent=71 // pred_check_branch
          %690 = sbr.rel (%p688) target = $region76
        $region75: #{tpu_custom_call.1} parent=71 // pred_region
          %691 = dma.done %s684, 128
        $region76: #{tpu_custom_call.1} parent=71 // pred_fallthru
          _
        %s692 = sand.u32 %s48, 1
        %s693 = scalar_lea.sflag [#allocation7], %s692
        %s694 = sand.u32 %s94, 1
        %s695 = smul.addr %s694, 16
        %s696 = scalar_lea.vmem [#allocation6], %s695
        // Predicated region
        $region77: #{tpu_custom_call.1} parent=71 // pred_check
          %p697 = pneg %p107
        $region78: #{tpu_custom_call.1} parent=71 // pred_check_branch
          %699 = sbr.rel (%p697) target = $region80
        $region79: #{tpu_custom_call.1} parent=71 // pred_region
          %700 = dma.done %s693, 256
        $region80: #{tpu_custom_call.1} parent=71 // pred_fallthru
          _
        %s701 = sand.u32 %s48, 1
        %s702 = scalar_lea.sflag [#allocation7], %s701
        %s703 = sand.u32 %s120, 1
        %s704 = scalar_lea.vmem [#allocation8], %s703
        // Predicated region
        $region81: #{tpu_custom_call.1} parent=71 // pred_check
          %p705 = pneg %p133
        $region82: #{tpu_custom_call.1} parent=71 // pred_check_branch
          %707 = sbr.rel (%p705) target = $region84
        $region83: #{tpu_custom_call.1} parent=71 // pred_region
          %708 = dma.done %s702, 16
        $region84: #{tpu_custom_call.1} parent=71 // pred_fallthru
          _
        %s709 = sand.u32 %s48, 1
        %s710 = scalar_lea.sflag [#allocation10], %s709
        %s711 = sand.u32 %s146, 1
        %s712 = smul.addr %s711, 16
        %s713 = scalar_lea.vmem [#allocation9], %s712
        // Predicated region
        $region85: #{tpu_custom_call.1} parent=71 // pred_check
          %p714 = pneg %p159
        $region86: #{tpu_custom_call.1} parent=71 // pred_check_branch
          %716 = sbr.rel (%p714) target = $region88
        $region87: #{tpu_custom_call.1} parent=71 // pred_region
          %717 = dma.done %s710, 256
        $region88: #{tpu_custom_call.1} parent=71 // pred_fallthru
          _
        %s718 = sand.u32 %s48, 1
        %s719 = scalar_lea.sflag [#allocation10], %s718
        %s720 = sand.u32 %s172, 1
        %s721 = scalar_lea.vmem [#allocation11], %s720
        // Predicated region
        $region89: #{tpu_custom_call.1} parent=71 // pred_check
          %p722 = pneg %p185
        $region90: #{tpu_custom_call.1} parent=71 // pred_check_branch
          %724 = sbr.rel (%p722) target = $region92
        $region91: #{tpu_custom_call.1} parent=71 // pred_region
          %725 = dma.done %s719, 16
        $region92: #{tpu_custom_call.1} parent=71 // pred_fallthru
          _
        %s726 = sand.u32 %s48, 1
        %s727 = scalar_lea.sflag [#allocation13], %s726
        %s728 = sand.u32 %s198, 1
        %s729 = scalar_lea.vmem [#allocation12], %s728
        // Predicated region
        $region93: #{tpu_custom_call.1} parent=71 // pred_check
          %p730 = pneg %p211
        $region94: #{tpu_custom_call.1} parent=71 // pred_check_branch
          %732 = sbr.rel (%p730) target = $region96
        $region95: #{tpu_custom_call.1} parent=71 // pred_region
          %733 = dma.done %s727, 16
        $region96: #{tpu_custom_call.1} parent=71 // pred_fallthru
          _
        %s734 = sand.u32 %s48, 1
        %s735 = scalar_lea.sflag [#allocation13], %s734
        %s736 = sand.u32 %s224, 1
        %s737 = scalar_lea.vmem [#allocation14], %s736
        // Predicated region
        $region97: #{tpu_custom_call.1} parent=71 // pred_check
          %p738 = pneg %p237
        $region98: #{tpu_custom_call.1} parent=71 // pred_check_branch
          %740 = sbr.rel (%p738) target = $region100
        $region99: #{tpu_custom_call.1} parent=71 // pred_region
          %741 = dma.done %s735, 16
        $region100: #{tpu_custom_call.1} parent=71 // pred_fallthru
          _
        %s742 = sand.u32 %s48, 1
        %s743 = scalar_lea.sflag [#allocation16], %s742
        %s744 = sand.u32 %s250, 1
        %s745 = smul.addr %s744, 16
        %s746 = scalar_lea.vmem [#allocation15], %s745
        // Predicated region
        $region101: #{tpu_custom_call.1} parent=71 // pred_check
          %p747 = pneg %p263
        $region102: #{tpu_custom_call.1} parent=71 // pred_check_branch
          %749 = sbr.rel (%p747) target = $region104
        $region103: #{tpu_custom_call.1} parent=71 // pred_region
          %750 = dma.done %s743, 256
        $region104: #{tpu_custom_call.1} parent=71 // pred_fallthru
          _
        %s751 = sand.u32 %s48, 1
        %s752 = scalar_lea.sflag [#allocation16], %s751
        %s753 = sand.u32 %s276, 1
        %s754 = scalar_lea.vmem [#allocation17], %s753
        // Predicated region
        $region105: #{tpu_custom_call.1} parent=71 // pred_check
          %p755 = pneg %p289
        $region106: #{tpu_custom_call.1} parent=71 // pred_check_branch
          %757 = sbr.rel (%p755) target = $region108
        $region107: #{tpu_custom_call.1} parent=71 // pred_region
          %758 = dma.done %s752, 16
        $region108: #{tpu_custom_call.1} parent=71 // pred_fallthru
          _
        %s759 = sand.u32 %s48, 1
        %s760 = scalar_lea.sflag [#allocation19], %s759
        %s761 = sand.u32 %s302, 1
        %s762 = smul.addr %s761, 32
        %s763 = scalar_lea.vmem [#allocation18], %s762
        // Predicated region
        $region109: #{tpu_custom_call.1} parent=71 // pred_check
          %p764 = pneg %p315
        $region110: #{tpu_custom_call.1} parent=71 // pred_check_branch
          %766 = sbr.rel (%p764) target = $region112
        $region111: #{tpu_custom_call.1} parent=71 // pred_region
          %767 = dma.done %s760, 512
        $region112: #{tpu_custom_call.1} parent=71 // pred_fallthru
          _
        %s768 = sand.u32 %s48, 1
        %s769 = scalar_lea.sflag [#allocation19], %s768
        %s770 = sand.u32 %s328, 1
        %s771 = scalar_lea.vmem [#allocation20], %s770
        // Predicated region
        $region113: #{tpu_custom_call.1} parent=71 // pred_check
          %p772 = pneg %p341
        $region114: #{tpu_custom_call.1} parent=71 // pred_check_branch
          %774 = sbr.rel (%p772) target = $region116
        $region115: #{tpu_custom_call.1} parent=71 // pred_region
          %775 = dma.done %s769, 16
        $region116: #{tpu_custom_call.1} parent=71 // pred_fallthru
          _
        %s776 = sand.u32 %s48, 1
        %s777 = scalar_lea.sflag [#allocation22], %s776
        %s778 = sand.u32 %s354, 1
        %s779 = scalar_lea.vmem [#allocation21], %s778
        // Predicated region
        $region117: #{tpu_custom_call.1} parent=71 // pred_check
          %p780 = pneg %p367
        $region118: #{tpu_custom_call.1} parent=71 // pred_check_branch
          %782 = sbr.rel (%p780) target = $region120
        $region119: #{tpu_custom_call.1} parent=71 // pred_region
          %783 = dma.done %s777, 16
        $region120: #{tpu_custom_call.1} parent=71 // pred_fallthru
          _
        %s784 = sand.u32 %s48, 1
        %s785 = scalar_lea.sflag [#allocation22], %s784
        %s786 = sand.u32 %s380, 1
        %s787 = scalar_lea.vmem [#allocation23], %s786
        // Predicated region
        $region121: #{tpu_custom_call.1} parent=71 // pred_check
          %p788 = pneg %p393
        $region122: #{tpu_custom_call.1} parent=71 // pred_check_branch
          %790 = sbr.rel (%p788) target = $region124
        $region123: #{tpu_custom_call.1} parent=71 // pred_region
          %791 = dma.done %s785, 16
        $region124: #{tpu_custom_call.1} parent=71 // pred_fallthru
          _
        %s792 = sand.u32 %s68, 1
        %s793 = scalar_lea.sflag [#allocation4], %s792
        %s794 = sand.u32 %s68, 1
        %s795 = smul.addr %s794, 8
        %s796 = scalar_lea.vmem [#allocation3], %s795
        %p797 = pneg %p81
        %p798 = pneg %p78
        %s799 = sand.u32 %s48, 1
        %s800 = scalar_lea.sflag [#allocation7], %s799
        %s801 = sand.u32 %s94, 1
        %s802 = smul.addr %s801, 16
        %s803 = scalar_lea.vmem [#allocation6], %s802
        %p804 = pneg %p107
        %p805 = pneg %p104
        %s806 = sand.u32 %s48, 1
        %s807 = scalar_lea.sflag [#allocation7], %s806
        %s808 = sand.u32 %s120, 1
        %s809 = scalar_lea.vmem [#allocation8], %s808
        %p810 = pneg %p133
        %p811 = pneg %p130
        %s812 = sand.u32 %s48, 1
        %s813 = scalar_lea.sflag [#allocation10], %s812
        %s814 = sand.u32 %s146, 1
        %s815 = smul.addr %s814, 16
        %s816 = scalar_lea.vmem [#allocation9], %s815
        %p817 = pneg %p159
        %p818 = pneg %p156
        %s819 = sand.u32 %s48, 1
        %s820 = scalar_lea.sflag [#allocation10], %s819
        %s821 = sand.u32 %s172, 1
        %s822 = scalar_lea.vmem [#allocation11], %s821
        %p823 = pneg %p185
        %p824 = pneg %p182
        %s825 = sand.u32 %s48, 1
        %s826 = scalar_lea.sflag [#allocation13], %s825
        %s827 = sand.u32 %s198, 1
        %s828 = scalar_lea.vmem [#allocation12], %s827
        %p829 = pneg %p211
        %p830 = pneg %p208
        %s831 = sand.u32 %s48, 1
        %s832 = scalar_lea.sflag [#allocation13], %s831
        %s833 = sand.u32 %s224, 1
        %s834 = scalar_lea.vmem [#allocation14], %s833
        %p835 = pneg %p237
        %p836 = pneg %p234
        %s837 = sand.u32 %s48, 1
        %s838 = scalar_lea.sflag [#allocation16], %s837
        %s839 = sand.u32 %s250, 1
        %s840 = smul.addr %s839, 16
        %s841 = scalar_lea.vmem [#allocation15], %s840
        %p842 = pneg %p263
        %p843 = pneg %p260
        %s844 = sand.u32 %s48, 1
        %s845 = scalar_lea.sflag [#allocation16], %s844
        %s846 = sand.u32 %s276, 1
        %s847 = scalar_lea.vmem [#allocation17], %s846
        %p848 = pneg %p289
        %p849 = pneg %p286
        %s850 = sand.u32 %s48, 1
        %s851 = scalar_lea.sflag [#allocation19], %s850
        %s852 = sand.u32 %s302, 1
        %s853 = smul.addr %s852, 32
        %s854 = scalar_lea.vmem [#allocation18], %s853
        %p855 = pneg %p315
        %p856 = pneg %p312
        %s857 = sand.u32 %s48, 1
        %s858 = scalar_lea.sflag [#allocation19], %s857
        %s859 = sand.u32 %s328, 1
        %s860 = scalar_lea.vmem [#allocation20], %s859
        %p861 = pneg %p341
        %p862 = pneg %p338
        %s863 = sand.u32 %s48, 1
        %s864 = scalar_lea.sflag [#allocation22], %s863
        %s865 = sand.u32 %s354, 1
        %s866 = scalar_lea.vmem [#allocation21], %s865
        %p867 = pneg %p367
        %p868 = pneg %p364
        %s869 = sand.u32 %s48, 1
        %s870 = scalar_lea.sflag [#allocation22], %s869
        %s871 = sand.u32 %s380, 1
        %s872 = scalar_lea.vmem [#allocation23], %s871
        %p873 = pneg %p393
        %p874 = pneg %p390
        %p875 = pneg %p419
        %p876 = pneg %p416
        %s877 = sand.u32 %s406, 1
        %s878 = scalar_lea.sflag [#allocation5], %s877
        %s879 = sand.u32 %s406, 1
        %s880 = smul.addr %s879, 8
        %s881 = scalar_lea.vmem [#allocation24], %s880
        %p883 = scmp.eq.s32.totalorder %s53, 0
        // Predicated region
        $region125: #{tpu_custom_call.1} parent=71 // pred_check
          %p884 = pneg %p883
        $region126: #{tpu_custom_call.1} parent=71 // pred_check_branch
          %886 = sbr.rel (%p884) target = $region128
        $region127: #{tpu_custom_call.1} parent=71 // pred_region
          %v887 = vld [vmem:[%s687] sm:$0xff]
          %vm888 = vcmask 261120
          %889 = vst.msk [vmem:[%s881] sm:$0xff] %vm888, %v887
        $region128: #{tpu_custom_call.1} parent=71 // pred_fallthru
          _
        %v890 = vld [vmem:[%s881] sm:$0xff]
        %v891 = vpack.c.bf16 %v890, %v890
        %v892 = vld [vmem:[%s696] sm:$0xf]
        %v893 = vld [vmem:[%s696 + $0x4] sm:$0xf]
        %v894 = vld [vmem:[%s696 + $0x8] sm:$0xf]
        %v895 = vld [vmem:[%s696 + $0xc] sm:$0xf]
        %v896 = vld [vmem:[%s704] sm:$0x1]
        %v898 = vlaneseq
        %v899 = vshrl.u32 %v898, 7
        %v900 = vsub.s32 0, %v899
        %v901 = vrot.slane %v896, %v900
        %v907 = vunpack.c.l.b16 %v892
        %v908 = vunpack.c.l.b16 %v893
        %v909 = vunpack.c.l.b16 %v894
        %v910 = vunpack.c.l.b16 %v895
        %v911 = vpack.c.b16 %v908, %v907
        %v912 = vpack.c.b16 %v910, %v909
        %vm915 = vcmask 261120
        %v917 = vsel %vm915, %v891, 0
        %919 = vmatprep.subr.bf16.mxu0 0
        %920 = vmatpush1.bf16.msra.mxu0 %v911
        %921 = vmatprep.subr.bf16.mxu0 0
        %922 = vmatpush1.bf16.msra.mxu0 %v912
        %923 = vmatprep.subr.bf16.mxu0 0
        %924 = vmatpush1.bf16.msra.mxu0 0
        %925 = vmatprep.subr.bf16.mxu0 0
        %926 = vmatpush1.bf16.msra.mxu0 0
        %927 = vmatprep.subr.bf16.mxu0 0
        %928 = vmatpush1.bf16.msra.mxu0 0
        %929 = vmatprep.subr.bf16.mxu0 0
        %930 = vmatpush1.bf16.msra.mxu0 0
        %931 = vmatprep.subr.bf16.mxu0 0
        %932 = vmatpush1.bf16.msra.mxu0 0
        %933 = vmatprep.subr.bf16.mxu0 0
        %934 = vmatpush1.bf16.msra.mxu0 0
        %935 = vmatprep.subr.bf16.mxu0 0
        %936 = vmatpush1.bf16.msra.mxu0 0
        %937 = vmatprep.subr.bf16.mxu0 0
        %938 = vmatpush1.bf16.msra.mxu0 0
        %939 = vmatprep.subr.bf16.mxu0 0
        %940 = vmatpush1.bf16.msra.mxu0 0
        %941 = vmatprep.subr.bf16.mxu0 0
        %942 = vmatpush1.bf16.msra.mxu0 0
        %943 = vmatprep.subr.bf16.mxu0 0
        %944 = vmatpush1.bf16.msra.mxu0 0
        %945 = vmatprep.subr.bf16.mxu0 0
        %946 = vmatpush1.bf16.msra.mxu0 0
        %947 = vmatprep.subr.bf16.mxu0 0
        %948 = vmatpush1.bf16.msra.mxu0 0
        %949 = vmatprep.subr.bf16.mxu0 0
        %950 = vmatpush1.bf16.msra.mxu0 0
        %951 = vmatprep.mubr.bf16.mxu0 0
        %952 = vmatmul.mubr.bf16.gmra.mrb[0].mxu0 %v917
        %v953 = vpop.f32.mrb[0].mxu0
        %v954 = vadd.f32 %v901, %v953
        %v955 = vpop.f32.mrb[0].mxu0
        %v956 = vpop.f32.mrb[0].mxu0
        %v957 = vpop.f32.mrb[0].mxu0
        %958 = vdwg.mxu0
        %v959 = vpack.c.bf16 %v954, %v954
        %vm960 = vcmask 781312
        %961 = vst.msk [vmem:[#allocation2] sm:$0xf] %vm960, %v959
        %v962 = vld [vmem:[#allocation2] sm:$0xf]
        %v964 = vunpack.c.l.b16 %v962
        %v965 = vpack.c.b16 %v964, %v964
        %966 = vrot.lane.b32.xlu0 %v965, 96
        %v967 = vpop.permute.xlu0 %966
        %vm968 = vcmask 64512
        %v970 = vsel %vm968, %v962, 0
        %v973 = vsel %vm968, %v967, 0
        %975 = vmatprep.subr.bf16.mxu0 0
        %976 = vmatpush1.bf16.xpose.msra.mxu0 %v973
        %977 = vmatprep.subr.bf16.mxu0 0
        %978 = vmatpush1.bf16.xpose.msra.mxu0 0
        %979 = vmatprep.subr.bf16.mxu0 0
        %980 = vmatpush1.bf16.xpose.msra.mxu0 0
        %981 = vmatprep.subr.bf16.mxu0 0
        %982 = vmatpush1.bf16.xpose.msra.mxu0 0
        %983 = vmatprep.subr.bf16.mxu0 0
        %984 = vmatpush1.bf16.xpose.msra.mxu0 0
        %985 = vmatprep.subr.bf16.mxu0 0
        %986 = vmatpush1.bf16.xpose.msra.mxu0 0
        %987 = vmatprep.subr.bf16.mxu0 0
        %988 = vmatpush1.bf16.xpose.msra.mxu0 0
        %989 = vmatprep.subr.bf16.mxu0 0
        %990 = vmatpush1.bf16.xpose.msra.mxu0 0
        %991 = vmatprep.subr.bf16.mxu0 0
        %992 = vmatpush1.bf16.xpose.msra.mxu0 0
        %993 = vmatprep.subr.bf16.mxu0 0
        %994 = vmatpush1.bf16.xpose.msra.mxu0 0
        %995 = vmatprep.subr.bf16.mxu0 0
        %996 = vmatpush1.bf16.xpose.msra.mxu0 0
        %997 = vmatprep.subr.bf16.mxu0 0
        %998 = vmatpush1.bf16.xpose.msra.mxu0 0
        %999 = vmatprep.subr.bf16.mxu0 0
        %1000 = vmatpush1.bf16.xpose.msra.mxu0 0
        %1001 = vmatprep.subr.bf16.mxu0 0
        %1002 = vmatpush1.bf16.xpose.msra.mxu0 0
        %1003 = vmatprep.subr.bf16.mxu0 0
        %1004 = vmatpush1.bf16.xpose.msra.mxu0 0
        %1005 = vmatprep.subr.bf16.mxu0 0
        %1006 = vmatpush1.bf16.xpose.msra.mxu0 0
        %1007 = vmatprep.mubr.bf16.mxu0 0
        %1008 = vmatmul.mubr.bf16.gmra.mrb[0].mxu0 %v970
        %v1009 = vpop.f32.mrb[0].mxu0
        %v1010 = vadd.f32 0.0, %v1009
        %v1011 = vpop.f32.mrb[0].mxu0
        %v1012 = vpop.f32.mrb[0].mxu0
        %v1013 = vpop.f32.mrb[0].mxu0
        %1014 = vdwg.mxu0
        %v1015 = vmul.f32 %v1010, 0.35355338
        %v1016 = vsel %vm968, %v1015, -inf
        %1017 = vmax.xlane.f32.xlu0 %v1016
        %v1018 = vpop.xlane.xlu0 %1017
        %v1019 = vsub.f32 %v1015, %v1018
        %v1020 = vmul.f32 %v1019, 1.442695
        %v1021 = vpow.pop %v1020
        %v1022 = vsel %vm968, %v1021, 0.0
        %1023 = vadd.xlane.f32.xlu0 %v1022
        %v1024 = vpop.xlane.xlu0 %1023
        %v1025 = vrcp.pop %v1024
        %v1026 = vmul.f32 %v1021, %v1025
        %v1027 = vpack.c.bf16 %v1026, %v1026
        %1028 = vrot.lane.b32.xlu0 %v965, 64
        %v1029 = vpop.permute.xlu0 %1028
        %v1031 = vsel %vm968, %v1027, 0
        %vm1033 = vcmask 1043456
        %v1035 = vsel %vm1033, %v1029, 0
        %1037 = vmatprep.subr.bf16.mxu0 0
        %1038 = vmatpush1.bf16.msra.mxu0 %v1035
        %1039 = vmatprep.subr.bf16.mxu0 0
        %1040 = vmatpush1.bf16.msra.mxu0 0
        %1041 = vmatprep.subr.bf16.mxu0 0
        %1042 = vmatpush1.bf16.msra.mxu0 0
        %1043 = vmatprep.subr.bf16.mxu0 0
        %1044 = vmatpush1.bf16.msra.mxu0 0
        %1045 = vmatprep.subr.bf16.mxu0 0
        %1046 = vmatpush1.bf16.msra.mxu0 0
        %1047 = vmatprep.subr.bf16.mxu0 0
        %1048 = vmatpush1.bf16.msra.mxu0 0
        %1049 = vmatprep.subr.bf16.mxu0 0
        %1050 = vmatpush1.bf16.msra.mxu0 0
        %1051 = vmatprep.subr.bf16.mxu0 0
        %1052 = vmatpush1.bf16.msra.mxu0 0
        %1053 = vmatprep.subr.bf16.mxu0 0
        %1054 = vmatpush1.bf16.msra.mxu0 0
        %1055 = vmatprep.subr.bf16.mxu0 0
        %1056 = vmatpush1.bf16.msra.mxu0 0
        %1057 = vmatprep.subr.bf16.mxu0 0
        %1058 = vmatpush1.bf16.msra.mxu0 0
        %1059 = vmatprep.subr.bf16.mxu0 0
        %1060 = vmatpush1.bf16.msra.mxu0 0
        %1061 = vmatprep.subr.bf16.mxu0 0
        %1062 = vmatpush1.bf16.msra.mxu0 0
        %1063 = vmatprep.subr.bf16.mxu0 0
        %1064 = vmatpush1.bf16.msra.mxu0 0
        %1065 = vmatprep.subr.bf16.mxu0 0
        %1066 = vmatpush1.bf16.msra.mxu0 0
        %1067 = vmatprep.subr.bf16.mxu0 0
        %1068 = vmatpush1.bf16.msra.mxu0 0
        %1069 = vmatprep.mubr.bf16.mxu0 0
        %1070 = vmatmul.mubr.bf16.gmra.mrb[0].mxu0 %v1031
        %v1071 = vpop.f32.mrb[0].mxu0
        %v1072 = vadd.f32 0.0, %v1071
        %v1073 = vpop.f32.mrb[0].mxu0
        %v1074 = vpop.f32.mrb[0].mxu0
        %v1075 = vpop.f32.mrb[0].mxu0
        %1076 = vdwg.mxu0
        %v1077 = vpack.c.bf16 %v1072, %v1072
        %v1078 = vld [vmem:[%s713] sm:$0xf]
        %v1079 = vld [vmem:[#allocation2] sm:$0xf]
        %v1081 = vunpack.c.l.b16 %v1079
        %v1082 = vpack.c.b16 %v1081, %v1081
        %1083 = vrot.lane.b32.xlu0 %v1082, 120
        %v1084 = vpop.permute.xlu0 %1083
        %1085 = vrot.lane.b32.xlu0 %v1082, 88
        %v1086 = vpop.permute.xlu0 %1085
        %v1088 = vsel %vm968, %v1084, 0
        %v1091 = vsel %vm968, %v1086, 0
        %1093 = vmatprep.subr.bf16.mxu0 0
        %1094 = vmatpush1.bf16.xpose.msra.mxu0 %v1091
        %1095 = vmatprep.subr.bf16.mxu0 0
        %1096 = vmatpush1.bf16.xpose.msra.mxu0 0
        %1097 = vmatprep.subr.bf16.mxu0 0
        %1098 = vmatpush1.bf16.xpose.msra.mxu0 0
        %1099 = vmatprep.subr.bf16.mxu0 0
        %1100 = vmatpush1.bf16.xpose.msra.mxu0 0
        %1101 = vmatprep.subr.bf16.mxu0 0
        %1102 = vmatpush1.bf16.xpose.msra.mxu0 0
        %1103 = vmatprep.subr.bf16.mxu0 0
        %1104 = vmatpush1.bf16.xpose.msra.mxu0 0
        %1105 = vmatprep.subr.bf16.mxu0 0
        %1106 = vmatpush1.bf16.xpose.msra.mxu0 0
        %1107 = vmatprep.subr.bf16.mxu0 0
        %1108 = vmatpush1.bf16.xpose.msra.mxu0 0
        %1109 = vmatprep.subr.bf16.mxu0 0
        %1110 = vmatpush1.bf16.xpose.msra.mxu0 0
        %1111 = vmatprep.subr.bf16.mxu0 0
        %1112 = vmatpush1.bf16.xpose.msra.mxu0 0
        %1113 = vmatprep.subr.bf16.mxu0 0
        %1114 = vmatpush1.bf16.xpose.msra.mxu0 0
        %1115 = vmatprep.subr.bf16.mxu0 0
        %1116 = vmatpush1.bf16.xpose.msra.mxu0 0
        %1117 = vmatprep.subr.bf16.mxu0 0
        %1118 = vmatpush1.bf16.xpose.msra.mxu0 0
        %1119 = vmatprep.subr.bf16.mxu0 0
        %1120 = vmatpush1.bf16.xpose.msra.mxu0 0
        %1121 = vmatprep.subr.bf16.mxu0 0
        %1122 = vmatpush1.bf16.xpose.msra.mxu0 0
        %1123 = vmatprep.subr.bf16.mxu0 0
        %1124 = vmatpush1.bf16.xpose.msra.mxu0 0
        %1125 = vmatprep.mubr.bf16.mxu0 0
        %1126 = vmatmul.mubr.bf16.gmra.mrb[0].mxu0 %v1088
        %v1127 = vpop.f32.mrb[0].mxu0
        %v1128 = vadd.f32 0.0, %v1127
        %v1129 = vpop.f32.mrb[0].mxu0
        %v1130 = vpop.f32.mrb[0].mxu0
        %v1131 = vpop.f32.mrb[0].mxu0
        %1132 = vdwg.mxu0
        %v1133 = vmul.f32 %v1128, 0.35355338
        %v1134 = vsel %vm968, %v1133, -inf
        %1135 = vmax.xlane.f32.xlu0 %v1134
        %v1136 = vpop.xlane.xlu0 %1135
        %v1137 = vsub.f32 %v1133, %v1136
        %v1138 = vmul.f32 %v1137, 1.442695
        %v1139 = vpow.pop %v1138
        %v1140 = vsel %vm968, %v1139, 0.0
        %1141 = vadd.xlane.f32.xlu0 %v1140
        %v1142 = vpop.xlane.xlu0 %1141
        %v1143 = vrcp.pop %v1142
        %v1144 = vmul.f32 %v1139, %v1143
        %v1145 = vpack.c.bf16 %v1144, %v1144
        %1146 = vrot.lane.b32.xlu0 %v1082, 56
        %v1147 = vpop.permute.xlu0 %1146
        %v1149 = vsel %vm968, %v1145, 0
        %v1152 = vsel %vm1033, %v1147, 0
        %1154 = vmatprep.subr.bf16.mxu0 0
        %1155 = vmatpush1.bf16.msra.mxu0 %v1152
        %1156 = vmatprep.subr.bf16.mxu0 0
        %1157 = vmatpush1.bf16.msra.mxu0 0
        %1158 = vmatprep.subr.bf16.mxu0 0
        %1159 = vmatpush1.bf16.msra.mxu0 0
        %1160 = vmatprep.subr.bf16.mxu0 0
        %1161 = vmatpush1.bf16.msra.mxu0 0
        %1162 = vmatprep.subr.bf16.mxu0 0
        %1163 = vmatpush1.bf16.msra.mxu0 0
        %1164 = vmatprep.subr.bf16.mxu0 0
        %1165 = vmatpush1.bf16.msra.mxu0 0
        %1166 = vmatprep.subr.bf16.mxu0 0
        %1167 = vmatpush1.bf16.msra.mxu0 0
        %1168 = vmatprep.subr.bf16.mxu0 0
        %1169 = vmatpush1.bf16.msra.mxu0 0
        %1170 = vmatprep.subr.bf16.mxu0 0
        %1171 = vmatpush1.bf16.msra.mxu0 0
        %1172 = vmatprep.subr.bf16.mxu0 0
        %1173 = vmatpush1.bf16.msra.mxu0 0
        %1174 = vmatprep.subr.bf16.mxu0 0
        %1175 = vmatpush1.bf16.msra.mxu0 0
        %1176 = vmatprep.subr.bf16.mxu0 0
        %1177 = vmatpush1.bf16.msra.mxu0 0
        %1178 = vmatprep.subr.bf16.mxu0 0
        %1179 = vmatpush1.bf16.msra.mxu0 0
        %1180 = vmatprep.subr.bf16.mxu0 0
        %1181 = vmatpush1.bf16.msra.mxu0 0
        %1182 = vmatprep.subr.bf16.mxu0 0
        %1183 = vmatpush1.bf16.msra.mxu0 0
        %1184 = vmatprep.subr.bf16.mxu0 0
        %1185 = vmatpush1.bf16.msra.mxu0 0
        %1186 = vmatprep.mubr.bf16.mxu0 0
        %1187 = vmatmul.mubr.bf16.gmra.mrb[0].mxu0 %v1149
        %v1188 = vpop.f32.mrb[0].mxu0
        %v1189 = vadd.f32 0.0, %v1188
        %v1190 = vpop.f32.mrb[0].mxu0
        %v1191 = vpop.f32.mrb[0].mxu0
        %v1192 = vpop.f32.mrb[0].mxu0
        %1193 = vdwg.mxu0
        %v1194 = vpack.c.bf16 %v1189, %v1189
        %v1195 = vld [vmem:[%s713 + $0x4] sm:$0xf]
        %v1197 = vsel %vm968, %v1194, 0
        %v1200 = vsel %vm1033, %v1195, 0
        %1202 = vmatprep.subr.bf16.mxu0 0
        %1203 = vmatpush1.bf16.msra.mxu0 %v1200
        %1204 = vmatprep.subr.bf16.mxu0 0
        %1205 = vmatpush1.bf16.msra.mxu0 0
        %1206 = vmatprep.subr.bf16.mxu0 0
        %1207 = vmatpush1.bf16.msra.mxu0 0
        %1208 = vmatprep.subr.bf16.mxu0 0
        %1209 = vmatpush1.bf16.msra.mxu0 0
        %1210 = vmatprep.subr.bf16.mxu0 0
        %1211 = vmatpush1.bf16.msra.mxu0 0
        %1212 = vmatprep.subr.bf16.mxu0 0
        %1213 = vmatpush1.bf16.msra.mxu0 0
        %1214 = vmatprep.subr.bf16.mxu0 0
        %1215 = vmatpush1.bf16.msra.mxu0 0
        %1216 = vmatprep.subr.bf16.mxu0 0
        %1217 = vmatpush1.bf16.msra.mxu0 0
        %1218 = vmatprep.subr.bf16.mxu0 0
        %1219 = vmatpush1.bf16.msra.mxu0 0
        %1220 = vmatprep.subr.bf16.mxu0 0
        %1221 = vmatpush1.bf16.msra.mxu0 0
        %1222 = vmatprep.subr.bf16.mxu0 0
        %1223 = vmatpush1.bf16.msra.mxu0 0
        %1224 = vmatprep.subr.bf16.mxu0 0
        %1225 = vmatpush1.bf16.msra.mxu0 0
        %1226 = vmatprep.subr.bf16.mxu0 0
        %1227 = vmatpush1.bf16.msra.mxu0 0
        %1228 = vmatprep.subr.bf16.mxu0 0
        %1229 = vmatpush1.bf16.msra.mxu0 0
        %1230 = vmatprep.subr.bf16.mxu0 0
        %1231 = vmatpush1.bf16.msra.mxu0 0
        %1232 = vmatprep.subr.bf16.mxu0 0
        %1233 = vmatpush1.bf16.msra.mxu0 0
        %1234 = vmatprep.mubr.bf16.mxu0 0
        %1235 = vmatmul.mubr.bf16.gmra.mrb[0].mxu0 %v1197
        %v1236 = vpop.f32.mrb[0].mxu0
        %v1237 = vadd.f32 0.0, %v1236
        %v1238 = vpop.f32.mrb[0].mxu0
        %v1239 = vpop.f32.mrb[0].mxu0
        %v1240 = vpop.f32.mrb[0].mxu0
        %1241 = vdwg.mxu0
        %v1243 = vsel %vm968, %v1077, 0
        %v1246 = vsel %vm1033, %v1078, 0
        %1248 = vmatprep.subr.bf16.mxu0 0
        %1249 = vmatpush1.bf16.msra.mxu0 %v1246
        %1250 = vmatprep.subr.bf16.mxu0 0
        %1251 = vmatpush1.bf16.msra.mxu0 0
        %1252 = vmatprep.subr.bf16.mxu0 0
        %1253 = vmatpush1.bf16.msra.mxu0 0
        %1254 = vmatprep.subr.bf16.mxu0 0
        %1255 = vmatpush1.bf16.msra.mxu0 0
        %1256 = vmatprep.subr.bf16.mxu0 0
        %1257 = vmatpush1.bf16.msra.mxu0 0
        %1258 = vmatprep.subr.bf16.mxu0 0
        %1259 = vmatpush1.bf16.msra.mxu0 0
        %1260 = vmatprep.subr.bf16.mxu0 0
        %1261 = vmatpush1.bf16.msra.mxu0 0
        %1262 = vmatprep.subr.bf16.mxu0 0
        %1263 = vmatpush1.bf16.msra.mxu0 0
        %1264 = vmatprep.subr.bf16.mxu0 0
        %1265 = vmatpush1.bf16.msra.mxu0 0
        %1266 = vmatprep.subr.bf16.mxu0 0
        %1267 = vmatpush1.bf16.msra.mxu0 0
        %1268 = vmatprep.subr.bf16.mxu0 0
        %1269 = vmatpush1.bf16.msra.mxu0 0
        %1270 = vmatprep.subr.bf16.mxu0 0
        %1271 = vmatpush1.bf16.msra.mxu0 0
        %1272 = vmatprep.subr.bf16.mxu0 0
        %1273 = vmatpush1.bf16.msra.mxu0 0
        %1274 = vmatprep.subr.bf16.mxu0 0
        %1275 = vmatpush1.bf16.msra.mxu0 0
        %1276 = vmatprep.subr.bf16.mxu0 0
        %1277 = vmatpush1.bf16.msra.mxu0 0
        %1278 = vmatprep.subr.bf16.mxu0 0
        %1279 = vmatpush1.bf16.msra.mxu0 0
        %1280 = vmatprep.mubr.bf16.mxu0 0
        %1281 = vmatmul.mubr.bf16.gmra.mrb[0].mxu0 %v1243
        %v1282 = vpop.f32.mrb[0].mxu0
        %v1283 = vadd.f32 %v1237, %v1282
        %v1284 = vpop.f32.mrb[0].mxu0
        %v1285 = vpop.f32.mrb[0].mxu0
        %v1286 = vpop.f32.mrb[0].mxu0
        %1287 = vdwg.mxu0
        %v1288 = vld [vmem:[#allocation2] sm:$0xf]
        %v1290 = vunpack.c.l.b16 %v1288
        %v1291 = vpack.c.b16 %v1290, %v1290
        %1292 = vrot.lane.b32.xlu0 %v1291, 112
        %v1293 = vpop.permute.xlu0 %1292
        %1294 = vrot.lane.b32.xlu0 %v1291, 80
        %v1295 = vpop.permute.xlu0 %1294
        %v1297 = vsel %vm968, %v1293, 0
        %v1300 = vsel %vm968, %v1295, 0
        %1302 = vmatprep.subr.bf16.mxu0 0
        %1303 = vmatpush1.bf16.xpose.msra.mxu0 %v1300
        %1304 = vmatprep.subr.bf16.mxu0 0
        %1305 = vmatpush1.bf16.xpose.msra.mxu0 0
        %1306 = vmatprep.subr.bf16.mxu0 0
        %1307 = vmatpush1.bf16.xpose.msra.mxu0 0
        %1308 = vmatprep.subr.bf16.mxu0 0
        %1309 = vmatpush1.bf16.xpose.msra.mxu0 0
        %1310 = vmatprep.subr.bf16.mxu0 0
        %1311 = vmatpush1.bf16.xpose.msra.mxu0 0
        %1312 = vmatprep.subr.bf16.mxu0 0
        %1313 = vmatpush1.bf16.xpose.msra.mxu0 0
        %1314 = vmatprep.subr.bf16.mxu0 0
        %1315 = vmatpush1.bf16.xpose.msra.mxu0 0
        %1316 = vmatprep.subr.bf16.mxu0 0
        %1317 = vmatpush1.bf16.xpose.msra.mxu0 0
        %1318 = vmatprep.subr.bf16.mxu0 0
        %1319 = vmatpush1.bf16.xpose.msra.mxu0 0
        %1320 = vmatprep.subr.bf16.mxu0 0
        %1321 = vmatpush1.bf16.xpose.msra.mxu0 0
        %1322 = vmatprep.subr.bf16.mxu0 0
        %1323 = vmatpush1.bf16.xpose.msra.mxu0 0
        %1324 = vmatprep.subr.bf16.mxu0 0
        %1325 = vmatpush1.bf16.xpose.msra.mxu0 0
        %1326 = vmatprep.subr.bf16.mxu0 0
        %1327 = vmatpush1.bf16.xpose.msra.mxu0 0
        %1328 = vmatprep.subr.bf16.mxu0 0
        %1329 = vmatpush1.bf16.xpose.msra.mxu0 0
        %1330 = vmatprep.subr.bf16.mxu0 0
        %1331 = vmatpush1.bf16.xpose.msra.mxu0 0
        %1332 = vmatprep.subr.bf16.mxu0 0
        %1333 = vmatpush1.bf16.xpose.msra.mxu0 0
        %1334 = vmatprep.mubr.bf16.mxu0 0
        %1335 = vmatmul.mubr.bf16.gmra.mrb[0].mxu0 %v1297
        %v1336 = vpop.f32.mrb[0].mxu0
        %v1337 = vadd.f32 0.0, %v1336
        %v1338 = vpop.f32.mrb[0].mxu0
        %v1339 = vpop.f32.mrb[0].mxu0
        %v1340 = vpop.f32.mrb[0].mxu0
        %1341 = vdwg.mxu0
        %v1342 = vmul.f32 %v1337, 0.35355338
        %v1343 = vsel %vm968, %v1342, -inf
        %1344 = vmax.xlane.f32.xlu0 %v1343
        %v1345 = vpop.xlane.xlu0 %1344
        %v1346 = vsub.f32 %v1342, %v1345
        %v1347 = vmul.f32 %v1346, 1.442695
        %v1348 = vpow.pop %v1347
        %v1349 = vsel %vm968, %v1348, 0.0
        %1350 = vadd.xlane.f32.xlu0 %v1349
        %v1351 = vpop.xlane.xlu0 %1350
        %v1352 = vrcp.pop %v1351
        %v1353 = vmul.f32 %v1348, %v1352
        %v1354 = vpack.c.bf16 %v1353, %v1353
        %1355 = vrot.lane.b32.xlu0 %v1291, 48
        %v1356 = vpop.permute.xlu0 %1355
        %v1358 = vsel %vm968, %v1354, 0
        %v1361 = vsel %vm1033, %v1356, 0
        %1363 = vmatprep.subr.bf16.mxu0 0
        %1364 = vmatpush1.bf16.msra.mxu0 %v1361
        %1365 = vmatprep.subr.bf16.mxu0 0
        %1366 = vmatpush1.bf16.msra.mxu0 0
        %1367 = vmatprep.subr.bf16.mxu0 0
        %1368 = vmatpush1.bf16.msra.mxu0 0
        %1369 = vmatprep.subr.bf16.mxu0 0
        %1370 = vmatpush1.bf16.msra.mxu0 0
        %1371 = vmatprep.subr.bf16.mxu0 0
        %1372 = vmatpush1.bf16.msra.mxu0 0
        %1373 = vmatprep.subr.bf16.mxu0 0
        %1374 = vmatpush1.bf16.msra.mxu0 0
        %1375 = vmatprep.subr.bf16.mxu0 0
        %1376 = vmatpush1.bf16.msra.mxu0 0
        %1377 = vmatprep.subr.bf16.mxu0 0
        %1378 = vmatpush1.bf16.msra.mxu0 0
        %1379 = vmatprep.subr.bf16.mxu0 0
        %1380 = vmatpush1.bf16.msra.mxu0 0
        %1381 = vmatprep.subr.bf16.mxu0 0
        %1382 = vmatpush1.bf16.msra.mxu0 0
        %1383 = vmatprep.subr.bf16.mxu0 0
        %1384 = vmatpush1.bf16.msra.mxu0 0
        %1385 = vmatprep.subr.bf16.mxu0 0
        %1386 = vmatpush1.bf16.msra.mxu0 0
        %1387 = vmatprep.subr.bf16.mxu0 0
        %1388 = vmatpush1.bf16.msra.mxu0 0
        %1389 = vmatprep.subr.bf16.mxu0 0
        %1390 = vmatpush1.bf16.msra.mxu0 0
        %1391 = vmatprep.subr.bf16.mxu0 0
        %1392 = vmatpush1.bf16.msra.mxu0 0
        %1393 = vmatprep.subr.bf16.mxu0 0
        %1394 = vmatpush1.bf16.msra.mxu0 0
        %1395 = vmatprep.mubr.bf16.mxu0 0
        %1396 = vmatmul.mubr.bf16.gmra.mrb[0].mxu0 %v1358
        %v1397 = vpop.f32.mrb[0].mxu0
        %v1398 = vadd.f32 0.0, %v1397
        %v1399 = vpop.f32.mrb[0].mxu0
        %v1400 = vpop.f32.mrb[0].mxu0
        %v1401 = vpop.f32.mrb[0].mxu0
        %1402 = vdwg.mxu0
        %v1403 = vpack.c.bf16 %v1398, %v1398
        %v1404 = vld [vmem:[%s713 + $0x8] sm:$0xf]
        %v1406 = vsel %vm968, %v1403, 0
        %v1409 = vsel %vm1033, %v1404, 0
        %1411 = vmatprep.subr.bf16.mxu0 0
        %1412 = vmatpush1.bf16.msra.mxu0 %v1409
        %1413 = vmatprep.subr.bf16.mxu0 0
        %1414 = vmatpush1.bf16.msra.mxu0 0
        %1415 = vmatprep.subr.bf16.mxu0 0
        %1416 = vmatpush1.bf16.msra.mxu0 0
        %1417 = vmatprep.subr.bf16.mxu0 0
        %1418 = vmatpush1.bf16.msra.mxu0 0
        %1419 = vmatprep.subr.bf16.mxu0 0
        %1420 = vmatpush1.bf16.msra.mxu0 0
        %1421 = vmatprep.subr.bf16.mxu0 0
        %1422 = vmatpush1.bf16.msra.mxu0 0
        %1423 = vmatprep.subr.bf16.mxu0 0
        %1424 = vmatpush1.bf16.msra.mxu0 0
        %1425 = vmatprep.subr.bf16.mxu0 0
        %1426 = vmatpush1.bf16.msra.mxu0 0
        %1427 = vmatprep.subr.bf16.mxu0 0
        %1428 = vmatpush1.bf16.msra.mxu0 0
        %1429 = vmatprep.subr.bf16.mxu0 0
        %1430 = vmatpush1.bf16.msra.mxu0 0
        %1431 = vmatprep.subr.bf16.mxu0 0
        %1432 = vmatpush1.bf16.msra.mxu0 0
        %1433 = vmatprep.subr.bf16.mxu0 0
        %1434 = vmatpush1.bf16.msra.mxu0 0
        %1435 = vmatprep.subr.bf16.mxu0 0
        %1436 = vmatpush1.bf16.msra.mxu0 0
        %1437 = vmatprep.subr.bf16.mxu0 0
        %1438 = vmatpush1.bf16.msra.mxu0 0
        %1439 = vmatprep.subr.bf16.mxu0 0
        %1440 = vmatpush1.bf16.msra.mxu0 0
        %1441 = vmatprep.subr.bf16.mxu0 0
        %1442 = vmatpush1.bf16.msra.mxu0 0
        %1443 = vmatprep.mubr.bf16.mxu0 0
        %1444 = vmatmul.mubr.bf16.gmra.mrb[0].mxu0 %v1406
        %v1445 = vpop.f32.mrb[0].mxu0
        %v1446 = vadd.f32 0.0, %v1445
        %v1447 = vpop.f32.mrb[0].mxu0
        %v1448 = vpop.f32.mrb[0].mxu0
        %v1449 = vpop.f32.mrb[0].mxu0
        %1450 = vdwg.mxu0
        %v1451 = vadd.f32 %v1283, %v1446
        %v1452 = vld [vmem:[#allocation2] sm:$0xf]
        %v1454 = vunpack.c.l.b16 %v1452
        %v1455 = vpack.c.b16 %v1454, %v1454
        %1456 = vrot.lane.b32.xlu0 %v1455, 104
        %v1457 = vpop.permute.xlu0 %1456
        %1458 = vrot.lane.b32.xlu0 %v1455, 72
        %v1459 = vpop.permute.xlu0 %1458
        %v1461 = vsel %vm968, %v1457, 0
        %v1464 = vsel %vm968, %v1459, 0
        %1466 = vmatprep.subr.bf16.mxu0 0
        %1467 = vmatpush1.bf16.xpose.msra.mxu0 %v1464
        %1468 = vmatprep.subr.bf16.mxu0 0
        %1469 = vmatpush1.bf16.xpose.msra.mxu0 0
        %1470 = vmatprep.subr.bf16.mxu0 0
        %1471 = vmatpush1.bf16.xpose.msra.mxu0 0
        %1472 = vmatprep.subr.bf16.mxu0 0
        %1473 = vmatpush1.bf16.xpose.msra.mxu0 0
        %1474 = vmatprep.subr.bf16.mxu0 0
        %1475 = vmatpush1.bf16.xpose.msra.mxu0 0
        %1476 = vmatprep.subr.bf16.mxu0 0
        %1477 = vmatpush1.bf16.xpose.msra.mxu0 0
        %1478 = vmatprep.subr.bf16.mxu0 0
        %1479 = vmatpush1.bf16.xpose.msra.mxu0 0
        %1480 = vmatprep.subr.bf16.mxu0 0
        %1481 = vmatpush1.bf16.xpose.msra.mxu0 0
        %1482 = vmatprep.subr.bf16.mxu0 0
        %1483 = vmatpush1.bf16.xpose.msra.mxu0 0
        %1484 = vmatprep.subr.bf16.mxu0 0
        %1485 = vmatpush1.bf16.xpose.msra.mxu0 0
        %1486 = vmatprep.subr.bf16.mxu0 0
        %1487 = vmatpush1.bf16.xpose.msra.mxu0 0
        %1488 = vmatprep.subr.bf16.mxu0 0
        %1489 = vmatpush1.bf16.xpose.msra.mxu0 0
        %1490 = vmatprep.subr.bf16.mxu0 0
        %1491 = vmatpush1.bf16.xpose.msra.mxu0 0
        %1492 = vmatprep.subr.bf16.mxu0 0
        %1493 = vmatpush1.bf16.xpose.msra.mxu0 0
        %1494 = vmatprep.subr.bf16.mxu0 0
        %1495 = vmatpush1.bf16.xpose.msra.mxu0 0
        %1496 = vmatprep.subr.bf16.mxu0 0
        %1497 = vmatpush1.bf16.xpose.msra.mxu0 0
        %1498 = vmatprep.mubr.bf16.mxu0 0
        %1499 = vmatmul.mubr.bf16.gmra.mrb[0].mxu0 %v1461
        %v1500 = vpop.f32.mrb[0].mxu0
        %v1501 = vadd.f32 0.0, %v1500
        %v1502 = vpop.f32.mrb[0].mxu0
        %v1503 = vpop.f32.mrb[0].mxu0
        %v1504 = vpop.f32.mrb[0].mxu0
        %1505 = vdwg.mxu0
        %v1506 = vmul.f32 %v1501, 0.35355338
        %v1507 = vsel %vm968, %v1506, -inf
        %1508 = vmax.xlane.f32.xlu0 %v1507
        %v1509 = vpop.xlane.xlu0 %1508
        %v1510 = vsub.f32 %v1506, %v1509
        %v1511 = vmul.f32 %v1510, 1.442695
        %v1512 = vpow.pop %v1511
        %v1513 = vsel %vm968, %v1512, 0.0
        %1514 = vadd.xlane.f32.xlu0 %v1513
        %v1515 = vpop.xlane.xlu0 %1514
        %v1516 = vrcp.pop %v1515
        %v1517 = vmul.f32 %v1512, %v1516
        %v1518 = vpack.c.bf16 %v1517, %v1517
        %1519 = vrot.lane.b32.xlu0 %v1455, 40
        %v1520 = vpop.permute.xlu0 %1519
        %v1522 = vsel %vm968, %v1518, 0
        %v1525 = vsel %vm1033, %v1520, 0
        %1527 = vmatprep.subr.bf16.mxu0 0
        %1528 = vmatpush1.bf16.msra.mxu0 %v1525
        %1529 = vmatprep.subr.bf16.mxu0 0
        %1530 = vmatpush1.bf16.msra.mxu0 0
        %1531 = vmatprep.subr.bf16.mxu0 0
        %1532 = vmatpush1.bf16.msra.mxu0 0
        %1533 = vmatprep.subr.bf16.mxu0 0
        %1534 = vmatpush1.bf16.msra.mxu0 0
        %1535 = vmatprep.subr.bf16.mxu0 0
        %1536 = vmatpush1.bf16.msra.mxu0 0
        %1537 = vmatprep.subr.bf16.mxu0 0
        %1538 = vmatpush1.bf16.msra.mxu0 0
        %1539 = vmatprep.subr.bf16.mxu0 0
        %1540 = vmatpush1.bf16.msra.mxu0 0
        %1541 = vmatprep.subr.bf16.mxu0 0
        %1542 = vmatpush1.bf16.msra.mxu0 0
        %1543 = vmatprep.subr.bf16.mxu0 0
        %1544 = vmatpush1.bf16.msra.mxu0 0
        %1545 = vmatprep.subr.bf16.mxu0 0
        %1546 = vmatpush1.bf16.msra.mxu0 0
        %1547 = vmatprep.subr.bf16.mxu0 0
        %1548 = vmatpush1.bf16.msra.mxu0 0
        %1549 = vmatprep.subr.bf16.mxu0 0
        %1550 = vmatpush1.bf16.msra.mxu0 0
        %1551 = vmatprep.subr.bf16.mxu0 0
        %1552 = vmatpush1.bf16.msra.mxu0 0
        %1553 = vmatprep.subr.bf16.mxu0 0
        %1554 = vmatpush1.bf16.msra.mxu0 0
        %1555 = vmatprep.subr.bf16.mxu0 0
        %1556 = vmatpush1.bf16.msra.mxu0 0
        %1557 = vmatprep.subr.bf16.mxu0 0
        %1558 = vmatpush1.bf16.msra.mxu0 0
        %1559 = vmatprep.mubr.bf16.mxu0 0
        %1560 = vmatmul.mubr.bf16.gmra.mrb[0].mxu0 %v1522
        %v1561 = vpop.f32.mrb[0].mxu0
        %v1562 = vadd.f32 0.0, %v1561
        %v1563 = vpop.f32.mrb[0].mxu0
        %v1564 = vpop.f32.mrb[0].mxu0
        %v1565 = vpop.f32.mrb[0].mxu0
        %1566 = vdwg.mxu0
        %v1567 = vpack.c.bf16 %v1562, %v1562
        %v1568 = vld [vmem:[%s713 + $0xc] sm:$0xf]
        %v1570 = vsel %vm968, %v1567, 0
        %v1573 = vsel %vm1033, %v1568, 0
        %1575 = vmatprep.subr.bf16.mxu0 0
        %1576 = vmatpush1.bf16.msra.mxu0 %v1573
        %1577 = vmatprep.subr.bf16.mxu0 0
        %1578 = vmatpush1.bf16.msra.mxu0 0
        %1579 = vmatprep.subr.bf16.mxu0 0
        %1580 = vmatpush1.bf16.msra.mxu0 0
        %1581 = vmatprep.subr.bf16.mxu0 0
        %1582 = vmatpush1.bf16.msra.mxu0 0
        %1583 = vmatprep.subr.bf16.mxu0 0
        %1584 = vmatpush1.bf16.msra.mxu0 0
        %1585 = vmatprep.subr.bf16.mxu0 0
        %1586 = vmatpush1.bf16.msra.mxu0 0
        %1587 = vmatprep.subr.bf16.mxu0 0
        %1588 = vmatpush1.bf16.msra.mxu0 0
        %1589 = vmatprep.subr.bf16.mxu0 0
        %1590 = vmatpush1.bf16.msra.mxu0 0
        %1591 = vmatprep.subr.bf16.mxu0 0
        %1592 = vmatpush1.bf16.msra.mxu0 0
        %1593 = vmatprep.subr.bf16.mxu0 0
        %1594 = vmatpush1.bf16.msra.mxu0 0
        %1595 = vmatprep.subr.bf16.mxu0 0
        %1596 = vmatpush1.bf16.msra.mxu0 0
        %1597 = vmatprep.subr.bf16.mxu0 0
        %1598 = vmatpush1.bf16.msra.mxu0 0
        %1599 = vmatprep.subr.bf16.mxu0 0
        %1600 = vmatpush1.bf16.msra.mxu0 0
        %1601 = vmatprep.subr.bf16.mxu0 0
        %1602 = vmatpush1.bf16.msra.mxu0 0
        %1603 = vmatprep.subr.bf16.mxu0 0
        %1604 = vmatpush1.bf16.msra.mxu0 0
        %1605 = vmatprep.subr.bf16.mxu0 0
        %1606 = vmatpush1.bf16.msra.mxu0 0
        %1607 = vmatprep.mubr.bf16.mxu0 0
        %1608 = vmatmul.mubr.bf16.gmra.mrb[0].mxu0 %v1570
        %v1609 = vpop.f32.mrb[0].mxu0
        %v1610 = vadd.f32 0.0, %v1609
        %v1611 = vpop.f32.mrb[0].mxu0
        %v1612 = vpop.f32.mrb[0].mxu0
        %v1613 = vpop.f32.mrb[0].mxu0
        %1614 = vdwg.mxu0
        %v1615 = vadd.f32 %v1451, %v1610
        %v1616 = vld [vmem:[%s721] sm:$0x1]
        %v1618 = vlaneseq
        %v1619 = vshrl.u32 %v1618, 7
        %v1620 = vsub.s32 0, %v1619
        %v1621 = vrot.slane %v1616, %v1620
        %v1623 = vadd.f32 %v1615, %v1621
        %v1624 = vadd.f32 %v1623, %v890
        %v1625 = vsel %vm915, %v1624, 0.0
        %1626 = vadd.xlane.f32.xlu0 %v1625
        %v1627 = vpop.xlane.xlu0 %1626
        %v1628 = vrcp.pop 32.0
        %v1629 = vmul.f32 %v1627, %v1628
        %v1630 = vsub.f32 %v1624, %v1629
        %v1631 = vmul.f32 %v1630, %v1630
        %v1632 = vsel %vm915, %v1631, 0.0
        %1633 = vadd.xlane.f32.xlu0 %v1632
        %v1634 = vpop.xlane.xlu0 %1633
        %v1635 = vmul.f32 %v1634, %v1628
        %v1636 = vadd.f32 %v1635, 1e-05
        %v1637 = vrsqrt.pop %v1636
        %v1638 = vmul.f32 %v1630, %v1637
        %v1639 = vld [vmem:[%s729] sm:$0x1]
        %v1641 = vlaneseq
        %v1642 = vshrl.u32 %v1641, 7
        %v1643 = vsub.s32 0, %v1642
        %v1644 = vrot.slane %v1639, %v1643
        %v1646 = vmul.f32 %v1638, %v1644
        %v1647 = vld [vmem:[%s737] sm:$0x1]
        %v1649 = vlaneseq
        %v1650 = vshrl.u32 %v1649, 7
        %v1651 = vsub.s32 0, %v1650
        %v1652 = vrot.slane %v1647, %v1651
        %v1654 = vadd.f32 %v1646, %v1652
        %v1655 = vpack.c.bf16 %v1654, %v1654
        %v1656 = vld [vmem:[%s746] sm:$0xf]
        %v1657 = vld [vmem:[%s746 + $0x4] sm:$0xf]
        %v1658 = vld [vmem:[%s746 + $0x8] sm:$0xf]
        %v1659 = vld [vmem:[%s746 + $0xc] sm:$0xf]
        %v1660 = vld [vmem:[%s754] sm:$0x1]
        %v1662 = vlaneseq
        %v1663 = vshrl.u32 %v1662, 7
        %v1664 = vsub.s32 0, %v1663
        %v1665 = vrot.slane %v1660, %v1664
        %v1671 = vunpack.c.l.b16 %v1656
        %v1672 = vunpack.c.l.b16 %v1657
        %v1673 = vunpack.c.l.b16 %v1658
        %v1674 = vunpack.c.l.b16 %v1659
        %v1675 = vpack.c.b16 %v1672, %v1671
        %v1676 = vpack.c.b16 %v1674, %v1673
        %v1680 = vsel %vm915, %v1655, 0
        %1682 = vmatprep.subr.bf16.mxu0 0
        %1683 = vmatpush1.bf16.msra.mxu0 %v1675
        %1684 = vmatprep.subr.bf16.mxu0 0
        %1685 = vmatpush1.bf16.msra.mxu0 %v1676
        %1686 = vmatprep.subr.bf16.mxu0 0
        %1687 = vmatpush1.bf16.msra.mxu0 0
        %1688 = vmatprep.subr.bf16.mxu0 0
        %1689 = vmatpush1.bf16.msra.mxu0 0
        %1690 = vmatprep.subr.bf16.mxu0 0
        %1691 = vmatpush1.bf16.msra.mxu0 0
        %1692 = vmatprep.subr.bf16.mxu0 0
        %1693 = vmatpush1.bf16.msra.mxu0 0
        %1694 = vmatprep.subr.bf16.mxu0 0
        %1695 = vmatpush1.bf16.msra.mxu0 0
        %1696 = vmatprep.subr.bf16.mxu0 0
        %1697 = vmatpush1.bf16.msra.mxu0 0
        %1698 = vmatprep.subr.bf16.mxu0 0
        %1699 = vmatpush1.bf16.msra.mxu0 0
        %1700 = vmatprep.subr.bf16.mxu0 0
        %1701 = vmatpush1.bf16.msra.mxu0 0
        %1702 = vmatprep.subr.bf16.mxu0 0
        %1703 = vmatpush1.bf16.msra.mxu0 0
        %1704 = vmatprep.subr.bf16.mxu0 0
        %1705 = vmatpush1.bf16.msra.mxu0 0
        %1706 = vmatprep.subr.bf16.mxu0 0
        %1707 = vmatpush1.bf16.msra.mxu0 0
        %1708 = vmatprep.subr.bf16.mxu0 0
        %1709 = vmatpush1.bf16.msra.mxu0 0
        %1710 = vmatprep.subr.bf16.mxu0 0
        %1711 = vmatpush1.bf16.msra.mxu0 0
        %1712 = vmatprep.subr.bf16.mxu0 0
        %1713 = vmatpush1.bf16.msra.mxu0 0
        %1714 = vmatprep.mubr.bf16.mxu0 0
        %1715 = vmatmul.mubr.bf16.gmra.mrb[0].mxu0 %v1680
        %v1716 = vpop.f32.mrb[0].mxu0
        %v1717 = vadd.f32 %v1665, %v1716
        %v1718 = vpop.f32.mrb[0].mxu0
        %v1719 = vpop.f32.mrb[0].mxu0
        %v1720 = vpop.f32.mrb[0].mxu0
        %1721 = vdwg.mxu0
        %v1722 = vmax.f32 %v1717, 0.0
        %v1723 = vpack.c.bf16 %v1722, %v1722
        %v1724 = vld [vmem:[%s763] sm:$0xf]
        %v1725 = vld [vmem:[%s763 + $0x4] sm:$0xf]
        %v1726 = vld [vmem:[%s763 + $0x8] sm:$0xf]
        %v1727 = vld [vmem:[%s763 + $0xc] sm:$0xf]
        %v1728 = vld [vmem:[%s763 + $0x10] sm:$0xf]
        %v1729 = vld [vmem:[%s763 + $0x14] sm:$0xf]
        %v1730 = vld [vmem:[%s763 + $0x18] sm:$0xf]
        %v1731 = vld [vmem:[%s763 + $0x1c] sm:$0xf]
        %v1732 = vld [vmem:[%s771] sm:$0x1]
        %v1734 = vlaneseq
        %v1735 = vshrl.u32 %v1734, 7
        %v1736 = vsub.s32 0, %v1735
        %v1737 = vrot.slane %v1732, %v1736
        %v1747 = vunpack.c.l.b16 %v1724
        %v1748 = vunpack.c.l.b16 %v1725
        %v1749 = vunpack.c.l.b16 %v1726
        %v1750 = vunpack.c.l.b16 %v1727
        %v1751 = vunpack.c.l.b16 %v1728
        %v1752 = vunpack.c.l.b16 %v1729
        %v1753 = vunpack.c.l.b16 %v1730
        %v1754 = vunpack.c.l.b16 %v1731
        %v1755 = vpack.c.b16 %v1748, %v1747
        %v1756 = vpack.c.b16 %v1750, %v1749
        %v1757 = vpack.c.b16 %v1752, %v1751
        %v1758 = vpack.c.b16 %v1754, %v1753
        %vm1763 = vcmask 523264
        %v1765 = vsel %vm1763, %v1723, 0
        %1767 = vmatprep.subr.bf16.mxu0 0
        %1768 = vmatpush1.bf16.msra.mxu0 %v1755
        %1769 = vmatprep.subr.bf16.mxu0 0
        %1770 = vmatpush1.bf16.msra.mxu0 %v1756
        %1771 = vmatprep.subr.bf16.mxu0 0
        %1772 = vmatpush1.bf16.msra.mxu0 %v1757
        %1773 = vmatprep.subr.bf16.mxu0 0
        %1774 = vmatpush1.bf16.msra.mxu0 %v1758
        %1775 = vmatprep.subr.bf16.mxu0 0
        %1776 = vmatpush1.bf16.msra.mxu0 0
        %1777 = vmatprep.subr.bf16.mxu0 0
        %1778 = vmatpush1.bf16.msra.mxu0 0
        %1779 = vmatprep.subr.bf16.mxu0 0
        %1780 = vmatpush1.bf16.msra.mxu0 0
        %1781 = vmatprep.subr.bf16.mxu0 0
        %1782 = vmatpush1.bf16.msra.mxu0 0
        %1783 = vmatprep.subr.bf16.mxu0 0
        %1784 = vmatpush1.bf16.msra.mxu0 0
        %1785 = vmatprep.subr.bf16.mxu0 0
        %1786 = vmatpush1.bf16.msra.mxu0 0
        %1787 = vmatprep.subr.bf16.mxu0 0
        %1788 = vmatpush1.bf16.msra.mxu0 0
        %1789 = vmatprep.subr.bf16.mxu0 0
        %1790 = vmatpush1.bf16.msra.mxu0 0
        %1791 = vmatprep.subr.bf16.mxu0 0
        %1792 = vmatpush1.bf16.msra.mxu0 0
        %1793 = vmatprep.subr.bf16.mxu0 0
        %1794 = vmatpush1.bf16.msra.mxu0 0
        %1795 = vmatprep.subr.bf16.mxu0 0
        %1796 = vmatpush1.bf16.msra.mxu0 0
        %1797 = vmatprep.subr.bf16.mxu0 0
        %1798 = vmatpush1.bf16.msra.mxu0 0
        %1799 = vmatprep.mubr.bf16.mxu0 0
        %1800 = vmatmul.mubr.bf16.gmra.mrb[0].mxu0 %v1765
        %v1801 = vpop.f32.mrb[0].mxu0
        %v1802 = vadd.f32 %v1737, %v1801
        %v1803 = vpop.f32.mrb[0].mxu0
        %v1804 = vpop.f32.mrb[0].mxu0
        %v1805 = vpop.f32.mrb[0].mxu0
        %1806 = vdwg.mxu0
        %v1807 = vadd.f32 %v1802, %v1654
        %v1808 = vsel %vm915, %v1807, 0.0
        %1809 = vadd.xlane.f32.xlu0 %v1808
        %v1810 = vpop.xlane.xlu0 %1809
        %v1811 = vmul.f32 %v1810, %v1628
        %v1812 = vsub.f32 %v1807, %v1811
        %v1813 = vmul.f32 %v1812, %v1812
        %v1814 = vsel %vm915, %v1813, 0.0
        %1815 = vadd.xlane.f32.xlu0 %v1814
        %v1816 = vpop.xlane.xlu0 %1815
        %v1817 = vmul.f32 %v1816, %v1628
        %v1818 = vadd.f32 %v1817, 1e-05
        %v1819 = vrsqrt.pop %v1818
        %v1820 = vmul.f32 %v1812, %v1819
        %v1821 = vld [vmem:[%s779] sm:$0x1]
        %v1823 = vlaneseq
        %v1824 = vshrl.u32 %v1823, 7
        %v1825 = vsub.s32 0, %v1824
        %v1826 = vrot.slane %v1821, %v1825
        %v1828 = vmul.f32 %v1820, %v1826
        %v1829 = vld [vmem:[%s787] sm:$0x1]
        %v1831 = vlaneseq
        %v1832 = vshrl.u32 %v1831, 7
        %v1833 = vsub.s32 0, %v1832
        %v1834 = vrot.slane %v1829, %v1833
        %v1836 = vadd.f32 %v1828, %v1834
        %1837 = vst.msk [vmem:[%s881] sm:$0xff] %vm915, %v1836
        %s1838 = sand.u32 %s406, 1
        %s1839 = scalar_lea.sflag [#allocation5], %s1838
        %s1840 = sand.u32 %s406, 1
        %s1841 = smul.addr %s1840, 8
        %s1842 = scalar_lea.vmem [#allocation24], %s1841
        // Predicated region
        $region129: #{tpu_custom_call.1} parent=71 // pred_check
          %p1843 = pneg %p416
        $region130: #{tpu_custom_call.1} parent=71 // pred_check_branch
          %1845 = sbr.rel (%p1843) target = $region132
        $region131: #{tpu_custom_call.1} parent=71 // pred_region
          %s1847 = ssub.s32 128, 128
          %1848 = vsyncadd %s1839, %s1847
          %s1849 = smul.addr %s52, 128
          %s1850 = scalar_lea.hbm %s13, %s1849
          %s1852 = sshll.u32 %s1842, 4
          %s1853 = int_to_ptr.vmem [resolvable:$true] %s1852
          %1855 = dma.vmem_to_hbm [thread:$0]  %s1853, 128, %s1850, %s1839
        $region132: #{tpu_custom_call.1} parent=71 // pred_fallthru
          _
      $region72: #{tpu_custom_call.1} parent=5 // pred_fallthru
        _
      %p1856 = scmp.le.s32.totalorder 2, %s43
      // Predicated region
      $region133: #{tpu_custom_call.1} parent=5 // pred_check
        %p1857 = pneg %p1856
      $region134: #{tpu_custom_call.1} parent=5 // pred_check_branch
        %1859 = sbr.rel (%p1857) target = $region136
      $region135: #{tpu_custom_call.1} parent=5 // pred_region
        %s1860 = ssub.s32 %s43, 2
        // Predicated region
        $region137: #{tpu_custom_call.1} parent=135 // pred_check
          %p1861 = pneg %p422
        $region138: #{tpu_custom_call.1} parent=135 // pred_check_branch
          %1863 = sbr.rel (%p1861) target = $region140
        $region139: #{tpu_custom_call.1} parent=135 // pred_region
          %s1864 = sand.u32 %s407, 1
          %s1865 = scalar_lea.sflag [#allocation5], %s1864
          %s1866 = sand.u32 %s407, 1
          %s1867 = smul.addr %s1866, 8
          %s1868 = scalar_lea.vmem [#allocation24], %s1867
          %1869 = dma.done %s1865, 128
        $region140: #{tpu_custom_call.1} parent=135 // pred_fallthru
          _
      $region136: #{tpu_custom_call.1} parent=5 // pred_fallthru
        _
    $region6: #{tpu_custom_call.1} parent=1 // loop_footer
      %s47 = sadd.s32 1, %s43
    $region7: #{tpu_custom_call.1} parent=1 // loop_footer_branch
      %42 = sbr.rel target = $region3
    $region8: #{tpu_custom_call.1} parent=1 // loop_exit
      _
    %1870 = vsyncpa [#allocation4], 1
    %s1871 = scalar_lea.sflag [#allocation4], 1
    %1872 = vsyncpa %s1871, 1
    %1873 = vsyncpa [#allocation7], 1
    %s1874 = scalar_lea.sflag [#allocation7], 1
    %1875 = vsyncpa %s1874, 1
    %1876 = vsyncpa [#allocation10], 1
    %s1877 = scalar_lea.sflag [#allocation10], 1
    %1878 = vsyncpa %s1877, 1
    %1879 = vsyncpa [#allocation13], 1
    %s1880 = scalar_lea.sflag [#allocation13], 1
    %1881 = vsyncpa %s1880, 1
    %1882 = vsyncpa [#allocation16], 1
    %s1883 = scalar_lea.sflag [#allocation16], 1
    %1884 = vsyncpa %s1883, 1
    %1885 = vsyncpa [#allocation19], 1
    %s1886 = scalar_lea.sflag [#allocation19], 1
    %1887 = vsyncpa %s1886, 1
    %1888 = vsyncpa [#allocation22], 1
    %s1889 = scalar_lea.sflag [#allocation22], 1
    %1890 = vsyncpa %s1889, 1
    %1891 = vsyncpa [#allocation5], 1
    %s1892 = scalar_lea.sflag [#allocation5], 1
    %1893 = vsyncpa %s1892, 1

</llo_original>
